<compile_context>
chip_gen: v7x
topology: tpu7x:2x2x1
jax: 0.10.0
libtpu: 0.0.40
codegen_flags: <defaults>
</compile_context>

<pallas_src>
import functools
import math

import jax
import jax.numpy as jnp
from jax.experimental import pallas as pl
from jax.experimental.pallas import tpu as pltpu


def encoder_stack_kernel(src_ref, pos_ref,
                         wq_ref, bq_ref, wk_ref, bk_ref, wv_ref, bv_ref,
                         wo_ref, bo_ref,
                         n1g_ref, n1b_ref,
                         w1_ref, b1_ref, w2_ref, b2_ref,
                         n2g_ref, n2b_ref,
                         out_ref,
                         *, num_heads):
    # TODO(synk): src_mask / src_key_padding_mask paths are not wired (the
    # module is exercised with mask=None, key_padding_mask=None).
    # TODO(synk): for DETR-scale S (~1000) add flash-style query tiling instead
    # of materializing the full (S, S) score tile per head.
    l = pl.program_id(1)

    # Layer 0 seeds the resident activation.  out_ref's block index is constant
    # along the layer axis, so the VMEM buffer persists across layers and is
    # only written back to HBM after the last layer for this batch element.
    @pl.when(l == 0)
    def _():
        out_ref[...] = src_ref[...]

    x = out_ref[...].astype(jnp.float32)          # (S, D) resident activation
    pos = pos_ref[...].astype(jnp.float32)        # (S, D)
    S, D = x.shape
    H = num_heads
    Hd = D // H
    scale = 1.0 / math.sqrt(Hd)

    # ---- self-attention -------------------------------------------------
    qk_in = x + pos                               # with_pos_embed (f32)
    qk_bf = qk_in.astype(jnp.bfloat16)
    x_bf = x.astype(jnp.bfloat16)

    q = jnp.dot(qk_bf, wq_ref[...], preferred_element_type=jnp.float32) + bq_ref[...]
    k = jnp.dot(qk_bf, wk_ref[...], preferred_element_type=jnp.float32) + bk_ref[...]
    v = jnp.dot(x_bf,  wv_ref[...], preferred_element_type=jnp.float32) + bv_ref[...]

    q_bf = q.astype(jnp.bfloat16)
    k_bf = k.astype(jnp.bfloat16)
    v_bf = v.astype(jnp.bfloat16)
    wo = wo_ref[...]                              # (D, D) bf16

    # Per-head attention: no k.T (dot_general contracts last dims), no concat
    # (fold W_o per head into a lane-dense f32 accumulator).
    attn = jnp.zeros((S, D), jnp.float32)
    for h in range(H):
        sl = slice(h * Hd, (h + 1) * Hd)
        s = jax.lax.dot_general(
            q_bf[:, sl], k_bf[:, sl],
            (((1,), (1,)), ((), ())),
            preferred_element_type=jnp.float32) * scale        # (S, S) f32
        s = s - jnp.max(s, axis=-1, keepdims=True)
        p = jnp.exp(s)
        p = p * pl.reciprocal(jnp.sum(p, axis=-1, keepdims=True), approx=True)
        o_h = jnp.dot(p.astype(jnp.bfloat16), v_bf[:, sl],
                      preferred_element_type=jnp.float32)      # (S, Hd)
        attn = attn + jnp.dot(o_h.astype(jnp.bfloat16), wo[sl, :],
                              preferred_element_type=jnp.float32)
    attn = attn + bo_ref[...]

    # ---- residual + LayerNorm1 (f32) ------------------------------------
    y = x + attn
    mu = jnp.mean(y, axis=-1, keepdims=True)
    var = jnp.mean((y - mu) ** 2, axis=-1, keepdims=True)
    y = (y - mu) * jax.lax.rsqrt(var + 1e-5) * n1g_ref[...] + n1b_ref[...]

    # ---- feed-forward (ReLU) --------------------------------------------
    h1 = jnp.dot(y.astype(jnp.bfloat16), w1_ref[...],
                 preferred_element_type=jnp.float32) + b1_ref[...]
    h1 = jnp.maximum(h1, 0.0)
    ffn = jnp.dot(h1.astype(jnp.bfloat16), w2_ref[...],
                  preferred_element_type=jnp.float32) + b2_ref[...]

    # ---- residual + LayerNorm2 (f32) ------------------------------------
    z = y + ffn
    mu2 = jnp.mean(z, axis=-1, keepdims=True)
    var2 = jnp.mean((z - mu2) ** 2, axis=-1, keepdims=True)
    z = (z - mu2) * jax.lax.rsqrt(var2 + 1e-5) * n2g_ref[...] + n2b_ref[...]

    out_ref[...] = z.astype(out_ref.dtype)


def transformer_encoder_forward(src_sbd, pos_sbd, stacked, num_heads):
    """Mirrors TransformerEncoder.forward with mask=None, norm=None.

    src_sbd, pos_sbd: (S, B, D) seq-first like PyTorch.
    stacked: dict of per-layer parameters stacked along a leading layer axis.
    """
    S, B, D = src_sbd.shape
    L = stacked["wq"].shape[0]
    Dff = stacked["w1"].shape[-1]

    # One layout change per forward (amortized over all fused layers).
    x = jnp.transpose(src_sbd, (1, 0, 2))     # (B, S, D)
    pos = jnp.transpose(pos_sbd, (1, 0, 2))   # (B, S, D)

    def act_spec():
        return pl.BlockSpec((None, S, D), lambda b, l: (b, 0, 0))

    def w_spec(shape):
        n = len(shape)
        return pl.BlockSpec((None,) + tuple(shape),
                            lambda b, l: (l,) + (0,) * n)

    in_specs = [
        act_spec(), act_spec(),                     # src, pos (per-batch tiles)
        w_spec((D, D)), w_spec((1, D)),             # Wq, bq
        w_spec((D, D)), w_spec((1, D)),             # Wk, bk
        w_spec((D, D)), w_spec((1, D)),             # Wv, bv
        w_spec((D, D)), w_spec((1, D)),             # Wo, bo
        w_spec((1, D)), w_spec((1, D)),             # norm1 gamma, beta
        w_spec((D, Dff)), w_spec((1, Dff)),         # linear1
        w_spec((Dff, D)), w_spec((1, D)),           # linear2
        w_spec((1, D)), w_spec((1, D)),             # norm2 gamma, beta
    ]
    out_spec = pl.BlockSpec((None, S, D), lambda b, l: (b, 0, 0))

    kernel = functools.partial(encoder_stack_kernel, num_heads=num_heads)
    out_bsd = pl.pallas_call(
        kernel,
        out_shape=jax.ShapeDtypeStruct((B, S, D), x.dtype),
        grid=(B, L),
        in_specs=in_specs,
        out_specs=out_spec,
        compiler_params=pltpu.CompilerParams(
            dimension_semantics=("parallel", "arbitrary"),
            vmem_limit_bytes=48 * 1024 * 1024),
    )(x, pos,
      stacked["wq"], stacked["bq"], stacked["wk"], stacked["bk"],
      stacked["wv"], stacked["bv"], stacked["wo"], stacked["bo"],
      stacked["n1g"], stacked["n1b"], stacked["w1"], stacked["b1"],
      stacked["w2"], stacked["b2"], stacked["n2g"], stacked["n2b"])

    # norm is None in this instantiation (common DETR encoder config).
    return jnp.transpose(out_bsd, (1, 0, 2))  # back to (S, B, D)


def init_layer_params(key, d_model, dim_feedforward):
    ks = jax.random.split(key, 6)
    sc = 0.02

    def nrm(k, shape):
        return (sc * jax.random.normal(k, shape)).astype(jnp.float32)

    return {
        "wq": nrm(ks[0], (d_model, d_model)), "bq": jnp.zeros((1, d_model), jnp.float32),
        "wk": nrm(ks[1], (d_model, d_model)), "bk": jnp.zeros((1, d_model), jnp.float32),
        "wv": nrm(ks[2], (d_model, d_model)), "bv": jnp.zeros((1, d_model), jnp.float32),
        "wo": nrm(ks[3], (d_model, d_model)), "bo": jnp.zeros((1, d_model), jnp.float32),
        "n1g": jnp.ones((1, d_model), jnp.float32), "n1b": jnp.zeros((1, d_model), jnp.float32),
        "w1": nrm(ks[4], (d_model, dim_feedforward)),
        "b1": jnp.zeros((1, dim_feedforward), jnp.float32),
        "w2": nrm(ks[5], (dim_feedforward, d_model)),
        "b2": jnp.zeros((1, d_model), jnp.float32),
        "n2g": jnp.ones((1, d_model), jnp.float32), "n2b": jnp.zeros((1, d_model), jnp.float32),
    }


_BF16_WEIGHTS = ("wq", "wk", "wv", "wo", "w1", "w2")


def stack_layer_params(layer_params):
    """Stack per-layer params along a leading layer axis; matmul weights -> bf16."""
    stacked = {}
    for name in layer_params[0]:
        arr = jnp.stack([p[name] for p in layer_params], axis=0)
        if name in _BF16_WEIGHTS:
            arr = arr.astype(jnp.bfloat16)
        stacked[name] = arr
    return stacked


if __name__ == "__main__":
    # Small, module-consistent shapes: seq=16, batch=2, d_model=32, heads=4,
    # ffn=64, layers=2.
    S, B, D = 16, 2, 32
    num_heads = 4
    dim_feedforward = 64
    num_layers = 2

    key = jax.random.PRNGKey(0)
    k_src, k_pos, k_params = jax.random.split(key, 3)
    src = jax.random.normal(k_src, (S, B, D), dtype=jnp.float32)
    pos = jax.random.normal(k_pos, (S, B, D), dtype=jnp.float32)

    layer_keys = jax.random.split(k_params, num_layers)
    layer_params = [init_layer_params(k, D, dim_feedforward) for k in layer_keys]
    stacked = stack_layer_params(layer_params)

    out = transformer_encoder_forward(src, pos, stacked, num_heads)
    out = jax.block_until_ready(out)
    assert out.shape == (S, B, D) and out.dtype == jnp.float32
    assert bool(jnp.all(jnp.isfinite(out)))
    print("KERNEL_OK")
</pallas_src>

<mosaic_0001>
module attributes {stable_mosaic.version = 11 : i64} {
  func.func @encoder_stack_kernel(%arg0: i32, %arg1: i32, %arg2: memref<1x16x32xf32, #tpu.memory_space<vmem>>, %arg3: memref<1x16x32xf32, #tpu.memory_space<vmem>>, %arg4: memref<1x32x32xbf16, #tpu.memory_space<vmem>>, %arg5: memref<1x1x32xf32, #tpu.memory_space<vmem>>, %arg6: memref<1x32x32xbf16, #tpu.memory_space<vmem>>, %arg7: memref<1x1x32xf32, #tpu.memory_space<vmem>>, %arg8: memref<1x32x32xbf16, #tpu.memory_space<vmem>>, %arg9: memref<1x1x32xf32, #tpu.memory_space<vmem>>, %arg10: memref<1x32x32xbf16, #tpu.memory_space<vmem>>, %arg11: memref<1x1x32xf32, #tpu.memory_space<vmem>>, %arg12: memref<1x1x32xf32, #tpu.memory_space<vmem>>, %arg13: memref<1x1x32xf32, #tpu.memory_space<vmem>>, %arg14: memref<1x32x64xbf16, #tpu.memory_space<vmem>>, %arg15: memref<1x1x64xf32, #tpu.memory_space<vmem>>, %arg16: memref<1x64x32xbf16, #tpu.memory_space<vmem>>, %arg17: memref<1x1x32xf32, #tpu.memory_space<vmem>>, %arg18: memref<1x1x32xf32, #tpu.memory_space<vmem>>, %arg19: memref<1x1x32xf32, #tpu.memory_space<vmem>>, %arg20: memref<1x16x32xf32, #tpu.memory_space<vmem>>) attributes {dimension_semantics = [#tpu.dimension_semantics<parallel>, #tpu.dimension_semantics<arbitrary>], iteration_bounds = array<i64: 2, 2>, scalar_prefetch = 0 : i64, scratch_operands = 0 : i64, tpu.core_type = #tpu.core_type<tc>, window_params = [{transform_indices = @transform_0, window_bounds = array<i64: 1, 16, 32>}, {transform_indices = @transform_1, window_bounds = array<i64: 1, 16, 32>}, {transform_indices = @transform_2, window_bounds = array<i64: 1, 32, 32>}, {transform_indices = @transform_3, window_bounds = array<i64: 1, 1, 32>}, {transform_indices = @transform_4, window_bounds = array<i64: 1, 32, 32>}, {transform_indices = @transform_5, window_bounds = array<i64: 1, 1, 32>}, {transform_indices = @transform_6, window_bounds = array<i64: 1, 32, 32>}, {transform_indices = @transform_7, window_bounds = array<i64: 1, 1, 32>}, {transform_indices = @transform_8, window_bounds = array<i64: 1, 32, 32>}, {transform_indices = @transform_9, window_bounds = array<i64: 1, 1, 32>}, {transform_indices = @transform_10, window_bounds = array<i64: 1, 1, 32>}, {transform_indices = @transform_11, window_bounds = array<i64: 1, 1, 32>}, {transform_indices = @transform_12, window_bounds = array<i64: 1, 32, 64>}, {transform_indices = @transform_13, window_bounds = array<i64: 1, 1, 64>}, {transform_indices = @transform_14, window_bounds = array<i64: 1, 64, 32>}, {transform_indices = @transform_15, window_bounds = array<i64: 1, 1, 32>}, {transform_indices = @transform_16, window_bounds = array<i64: 1, 1, 32>}, {transform_indices = @transform_17, window_bounds = array<i64: 1, 1, 32>}, {transform_indices = @transform_18, window_bounds = array<i64: 1, 16, 32>}]} {
    %c0_i32 = arith.constant 0 : i32
    %0 = arith.cmpi eq, %arg1, %c0_i32 : i32
    %1 = arith.extui %0 : i1 to i32
    %c0_i32_0 = arith.constant 0 : i32
    %2 = arith.cmpi ne, %1, %c0_i32_0 : i32
    scf.if %2 {
      %c0_97 = arith.constant 0 : index
      %c0_98 = arith.constant 0 : index
      %c0_99 = arith.constant 0 : index
      %204 = vector.load %arg2[%c0_97, %c0_98, %c0_99] : memref<1x16x32xf32, #tpu.memory_space<vmem>>, vector<1x16x32xf32>
      %205 = vector.shape_cast %204 : vector<1x16x32xf32> to vector<16x32xf32>
      %c0_100 = arith.constant 0 : index
      %c0_101 = arith.constant 0 : index
      %c0_102 = arith.constant 0 : index
      %206 = vector.load %arg20[%c0_100, %c0_101, %c0_102] : memref<1x16x32xf32, #tpu.memory_space<vmem>>, vector<1x16x32xf32>
      %207 = vector.shape_cast %206 : vector<1x16x32xf32> to vector<16x32xf32>
      %208 = vector.shape_cast %205 : vector<16x32xf32> to vector<1x16x32xf32>
      tpu.vector_store %arg20[%c0_100, %c0_101, %c0_102], %208 {strides = array<i32>} : memref<1x16x32xf32, #tpu.memory_space<vmem>>, vector<1x16x32xf32>,
    } else {
    }
    %c0 = arith.constant 0 : index
    %c0_1 = arith.constant 0 : index
    %c0_2 = arith.constant 0 : index
    %3 = vector.load %arg20[%c0, %c0_1, %c0_2] : memref<1x16x32xf32, #tpu.memory_space<vmem>>, vector<1x16x32xf32>
    %4 = vector.shape_cast %3 : vector<1x16x32xf32> to vector<16x32xf32>
    %c0_3 = arith.constant 0 : index
    %c0_4 = arith.constant 0 : index
    %c0_5 = arith.constant 0 : index
    %5 = vector.load %arg3[%c0_3, %c0_4, %c0_5] : memref<1x16x32xf32, #tpu.memory_space<vmem>>, vector<1x16x32xf32>
    %6 = vector.shape_cast %5 : vector<1x16x32xf32> to vector<16x32xf32>
    %7 = arith.addf %4, %6 : vector<16x32xf32>
    %8 = arith.truncf %7 : vector<16x32xf32> to vector<16x32xbf16>
    %9 = arith.truncf %4 : vector<16x32xf32> to vector<16x32xbf16>
    %c0_6 = arith.constant 0 : index
    %c0_7 = arith.constant 0 : index
    %c0_8 = arith.constant 0 : index
    %10 = vector.load %arg4[%c0_6, %c0_7, %c0_8] : memref<1x32x32xbf16, #tpu.memory_space<vmem>>, vector<1x32x32xbf16>
    %11 = vector.shape_cast %10 : vector<1x32x32xbf16> to vector<32x32xbf16>
    %cst = arith.constant dense<0.000000e+00> : vector<16x32xf32>
    %12 = tpu.matmul %8, %11, %cst {dimension_numbers = #tpu.dot_dimension_numbers<[1], [0], [0], [1], [0, 0, 1, 1], [], []>} : vector<16x32xbf16>, vector<32x32xbf16>, vector<16x32xf32> -> vector<16x32xf32>
    %c0_9 = arith.constant 0 : index
    %c0_10 = arith.constant 0 : index
    %c0_11 = arith.constant 0 : index
    %13 = vector.load %arg5[%c0_9, %c0_10, %c0_11] : memref<1x1x32xf32, #tpu.memory_space<vmem>>, vector<1x1x32xf32>
    %14 = vector.shape_cast %13 : vector<1x1x32xf32> to vector<1x32xf32>
    %15 = vector.broadcast %14 : vector<1x32xf32> to vector<16x32xf32>
    %16 = arith.addf %12, %15 : vector<16x32xf32>
    %c0_12 = arith.constant 0 : index
    %c0_13 = arith.constant 0 : index
    %c0_14 = arith.constant 0 : index
    %17 = vector.load %arg6[%c0_12, %c0_13, %c0_14] : memref<1x32x32xbf16, #tpu.memory_space<vmem>>, vector<1x32x32xbf16>
    %18 = vector.shape_cast %17 : vector<1x32x32xbf16> to vector<32x32xbf16>
    %cst_15 = arith.constant dense<0.000000e+00> : vector<16x32xf32>
    %19 = tpu.matmul %8, %18, %cst_15 {dimension_numbers = #tpu.dot_dimension_numbers<[1], [0], [0], [1], [0, 0, 1, 1], [], []>} : vector<16x32xbf16>, vector<32x32xbf16>, vector<16x32xf32> -> vector<16x32xf32>
    %c0_16 = arith.constant 0 : index
    %c0_17 = arith.constant 0 : index
    %c0_18 = arith.constant 0 : index
    %20 = vector.load %arg7[%c0_16, %c0_17, %c0_18] : memref<1x1x32xf32, #tpu.memory_space<vmem>>, vector<1x1x32xf32>
    %21 = vector.shape_cast %20 : vector<1x1x32xf32> to vector<1x32xf32>
    %22 = vector.broadcast %21 : vector<1x32xf32> to vector<16x32xf32>
    %23 = arith.addf %19, %22 : vector<16x32xf32>
    %c0_19 = arith.constant 0 : index
    %c0_20 = arith.constant 0 : index
    %c0_21 = arith.constant 0 : index
    %24 = vector.load %arg8[%c0_19, %c0_20, %c0_21] : memref<1x32x32xbf16, #tpu.memory_space<vmem>>, vector<1x32x32xbf16>
    %25 = vector.shape_cast %24 : vector<1x32x32xbf16> to vector<32x32xbf16>
    %cst_22 = arith.constant dense<0.000000e+00> : vector<16x32xf32>
    %26 = tpu.matmul %9, %25, %cst_22 {dimension_numbers = #tpu.dot_dimension_numbers<[1], [0], [0], [1], [0, 0, 1, 1], [], []>} : vector<16x32xbf16>, vector<32x32xbf16>, vector<16x32xf32> -> vector<16x32xf32>
    %c0_23 = arith.constant 0 : index
    %c0_24 = arith.constant 0 : index
    %c0_25 = arith.constant 0 : index
    %27 = vector.load %arg9[%c0_23, %c0_24, %c0_25] : memref<1x1x32xf32, #tpu.memory_space<vmem>>, vector<1x1x32xf32>
    %28 = vector.shape_cast %27 : vector<1x1x32xf32> to vector<1x32xf32>
    %29 = vector.broadcast %28 : vector<1x32xf32> to vector<16x32xf32>
    %30 = arith.addf %26, %29 : vector<16x32xf32>
    %31 = arith.truncf %16 : vector<16x32xf32> to vector<16x32xbf16>
    %32 = arith.truncf %23 : vector<16x32xf32> to vector<16x32xbf16>
    %33 = arith.truncf %30 : vector<16x32xf32> to vector<16x32xbf16>
    %c0_26 = arith.constant 0 : index
    %c0_27 = arith.constant 0 : index
    %c0_28 = arith.constant 0 : index
    %34 = vector.load %arg10[%c0_26, %c0_27, %c0_28] : memref<1x32x32xbf16, #tpu.memory_space<vmem>>, vector<1x32x32xbf16>
    %35 = vector.shape_cast %34 : vector<1x32x32xbf16> to vector<32x32xbf16>
    %cst_29 = arith.constant 0.000000e+00 : f32
    %36 = vector.broadcast %cst_29 : f32 to vector<16x32xf32>
    %37 = vector.extract_strided_slice %31 {offsets = [0, 0], sizes = [16, 8], strides = [1, 1]} : vector<16x32xbf16> to vector<16x8xbf16>
    %38 = vector.extract_strided_slice %32 {offsets = [0, 0], sizes = [16, 8], strides = [1, 1]} : vector<16x32xbf16> to vector<16x8xbf16>
    %cst_30 = arith.constant dense<0.000000e+00> : vector<16x16xf32>
    %39 = tpu.matmul %37, %38, %cst_30 {dimension_numbers = #tpu.dot_dimension_numbers<[1], [1], [0], [0], [0, 0, 1, 0], [], []>} : vector<16x8xbf16>, vector<16x8xbf16>, vector<16x16xf32> -> vector<16x16xf32>
    %cst_31 = arith.constant 0.353553385 : f32
    %40 = vector.broadcast %cst_31 : f32 to vector<16x16xf32>
    %41 = arith.mulf %39, %40 : vector<16x16xf32>
    %cst_32 = arith.constant dense<0xFF800000> : vector<16xf32>
    %42 = vector.multi_reduction <maximumf>, %41, %cst_32 [1] : vector<16x16xf32> to vector<16xf32>
    %43 = vector.shape_cast %42 : vector<16xf32> to vector<16x1xf32>
    %44 = vector.broadcast %43 : vector<16x1xf32> to vector<16x16xf32>
    %45 = arith.subf %41, %44 : vector<16x16xf32>
    %46 = math.exp %45 : vector<16x16xf32>
    %cst_33 = arith.constant dense<0.000000e+00> : vector<16xf32>
    %47 = vector.multi_reduction <add>, %46, %cst_33 [1] : vector<16x16xf32> to vector<16xf32>
    %48 = vector.shape_cast %47 : vector<16xf32> to vector<16x1xf32>
    %49 = tpu.reciprocal %48 {approx = true} : vector<16x1xf32> -> vector<16x1xf32>
    %50 = vector.broadcast %49 : vector<16x1xf32> to vector<16x16xf32>
    %51 = arith.mulf %46, %50 : vector<16x16xf32>
    %52 = arith.truncf %51 : vector<16x16xf32> to vector<16x16xbf16>
    %53 = vector.extract_strided_slice %33 {offsets = [0, 0], sizes = [16, 8], strides = [1, 1]} : vector<16x32xbf16> to vector<16x8xbf16>
    %cst_34 = arith.constant dense<0.000000e+00> : vector<16x8xf32>
    %54 = tpu.matmul %52, %53, %cst_34 {dimension_numbers = #tpu.dot_dimension_numbers<[1], [0], [0], [1], [0, 0, 1, 1], [], []>} : vector<16x16xbf16>, vector<16x8xbf16>, vector<16x8xf32> -> vector<16x8xf32>
    %55 = arith.truncf %54 : vector<16x8xf32> to vector<16x8xbf16>
    %56 = vector.extract_strided_slice %35 {offsets = [0, 0], sizes = [8, 32], strides = [1, 1]} : vector<32x32xbf16> to vector<8x32xbf16>
    %cst_35 = arith.constant dense<0.000000e+00> : vector<16x32xf32>
    %57 = tpu.matmul %55, %56, %cst_35 {dimension_numbers = #tpu.dot_dimension_numbers<[1], [0], [0], [1], [0, 0, 1, 1], [], []>} : vector<16x8xbf16>, vector<8x32xbf16>, vector<16x32xf32> -> vector<16x32xf32>
    %58 = arith.addf %36, %57 : vector<16x32xf32>
    %59 = vector.extract_strided_slice %31 {offsets = [0, 8], sizes = [16, 8], strides = [1, 1]} : vector<16x32xbf16> to vector<16x8xbf16>
    %60 = vector.extract_strided_slice %32 {offsets = [0, 8], sizes = [16, 8], strides = [1, 1]} : vector<16x32xbf16> to vector<16x8xbf16>
    %cst_36 = arith.constant dense<0.000000e+00> : vector<16x16xf32>
    %61 = tpu.matmul %59, %60, %cst_36 {dimension_numbers = #tpu.dot_dimension_numbers<[1], [1], [0], [0], [0, 0, 1, 0], [], []>} : vector<16x8xbf16>, vector<16x8xbf16>, vector<16x16xf32> -> vector<16x16xf32>
    %cst_37 = arith.constant 0.353553385 : f32
    %62 = vector.broadcast %cst_37 : f32 to vector<16x16xf32>
    %63 = arith.mulf %61, %62 : vector<16x16xf32>
    %cst_38 = arith.constant dense<0xFF800000> : vector<16xf32>
    %64 = vector.multi_reduction <maximumf>, %63, %cst_38 [1] : vector<16x16xf32> to vector<16xf32>
    %65 = vector.shape_cast %64 : vector<16xf32> to vector<16x1xf32>
    %66 = vector.broadcast %65 : vector<16x1xf32> to vector<16x16xf32>
    %67 = arith.subf %63, %66 : vector<16x16xf32>
    %68 = math.exp %67 : vector<16x16xf32>
    %cst_39 = arith.constant dense<0.000000e+00> : vector<16xf32>
    %69 = vector.multi_reduction <add>, %68, %cst_39 [1] : vector<16x16xf32> to vector<16xf32>
    %70 = vector.shape_cast %69 : vector<16xf32> to vector<16x1xf32>
    %71 = tpu.reciprocal %70 {approx = true} : vector<16x1xf32> -> vector<16x1xf32>
    %72 = vector.broadcast %71 : vector<16x1xf32> to vector<16x16xf32>
    %73 = arith.mulf %68, %72 : vector<16x16xf32>
    %74 = arith.truncf %73 : vector<16x16xf32> to vector<16x16xbf16>
    %75 = vector.extract_strided_slice %33 {offsets = [0, 8], sizes = [16, 8], strides = [1, 1]} : vector<16x32xbf16> to vector<16x8xbf16>
    %cst_40 = arith.constant dense<0.000000e+00> : vector<16x8xf32>
    %76 = tpu.matmul %74, %75, %cst_40 {dimension_numbers = #tpu.dot_dimension_numbers<[1], [0], [0], [1], [0, 0, 1, 1], [], []>} : vector<16x16xbf16>, vector<16x8xbf16>, vector<16x8xf32> -> vector<16x8xf32>
    %77 = arith.truncf %76 : vector<16x8xf32> to vector<16x8xbf16>
    %78 = vector.extract_strided_slice %35 {offsets = [8, 0], sizes = [8, 32], strides = [1, 1]} : vector<32x32xbf16> to vector<8x32xbf16>
    %cst_41 = arith.constant dense<0.000000e+00> : vector<16x32xf32>
    %79 = tpu.matmul %77, %78, %cst_41 {dimension_numbers = #tpu.dot_dimension_numbers<[1], [0], [0], [1], [0, 0, 1, 1], [], []>} : vector<16x8xbf16>, vector<8x32xbf16>, vector<16x32xf32> -> vector<16x32xf32>
    %80 = arith.addf %58, %79 : vector<16x32xf32>
    %81 = vector.extract_strided_slice %31 {offsets = [0, 16], sizes = [16, 8], strides = [1, 1]} : vector<16x32xbf16> to vector<16x8xbf16>
    %82 = vector.extract_strided_slice %32 {offsets = [0, 16], sizes = [16, 8], strides = [1, 1]} : vector<16x32xbf16> to vector<16x8xbf16>
    %cst_42 = arith.constant dense<0.000000e+00> : vector<16x16xf32>
    %83 = tpu.matmul %81, %82, %cst_42 {dimension_numbers = #tpu.dot_dimension_numbers<[1], [1], [0], [0], [0, 0, 1, 0], [], []>} : vector<16x8xbf16>, vector<16x8xbf16>, vector<16x16xf32> -> vector<16x16xf32>
    %cst_43 = arith.constant 0.353553385 : f32
    %84 = vector.broadcast %cst_43 : f32 to vector<16x16xf32>
    %85 = arith.mulf %83, %84 : vector<16x16xf32>
    %cst_44 = arith.constant dense<0xFF800000> : vector<16xf32>
    %86 = vector.multi_reduction <maximumf>, %85, %cst_44 [1] : vector<16x16xf32> to vector<16xf32>
    %87 = vector.shape_cast %86 : vector<16xf32> to vector<16x1xf32>
    %88 = vector.broadcast %87 : vector<16x1xf32> to vector<16x16xf32>
    %89 = arith.subf %85, %88 : vector<16x16xf32>
    %90 = math.exp %89 : vector<16x16xf32>
    %cst_45 = arith.constant dense<0.000000e+00> : vector<16xf32>
    %91 = vector.multi_reduction <add>, %90, %cst_45 [1] : vector<16x16xf32> to vector<16xf32>
    %92 = vector.shape_cast %91 : vector<16xf32> to vector<16x1xf32>
    %93 = tpu.reciprocal %92 {approx = true} : vector<16x1xf32> -> vector<16x1xf32>
    %94 = vector.broadcast %93 : vector<16x1xf32> to vector<16x16xf32>
    %95 = arith.mulf %90, %94 : vector<16x16xf32>
    %96 = arith.truncf %95 : vector<16x16xf32> to vector<16x16xbf16>
    %97 = vector.extract_strided_slice %33 {offsets = [0, 16], sizes = [16, 8], strides = [1, 1]} : vector<16x32xbf16> to vector<16x8xbf16>
    %cst_46 = arith.constant dense<0.000000e+00> : vector<16x8xf32>
    %98 = tpu.matmul %96, %97, %cst_46 {dimension_numbers = #tpu.dot_dimension_numbers<[1], [0], [0], [1], [0, 0, 1, 1], [], []>} : vector<16x16xbf16>, vector<16x8xbf16>, vector<16x8xf32> -> vector<16x8xf32>
    %99 = arith.truncf %98 : vector<16x8xf32> to vector<16x8xbf16>
    %100 = vector.extract_strided_slice %35 {offsets = [16, 0], sizes = [8, 32], strides = [1, 1]} : vector<32x32xbf16> to vector<8x32xbf16>
    %cst_47 = arith.constant dense<0.000000e+00> : vector<16x32xf32>
    %101 = tpu.matmul %99, %100, %cst_47 {dimension_numbers = #tpu.dot_dimension_numbers<[1], [0], [0], [1], [0, 0, 1, 1], [], []>} : vector<16x8xbf16>, vector<8x32xbf16>, vector<16x32xf32> -> vector<16x32xf32>
    %102 = arith.addf %80, %101 : vector<16x32xf32>
    %103 = vector.extract_strided_slice %31 {offsets = [0, 24], sizes = [16, 8], strides = [1, 1]} : vector<16x32xbf16> to vector<16x8xbf16>
    %104 = vector.extract_strided_slice %32 {offsets = [0, 24], sizes = [16, 8], strides = [1, 1]} : vector<16x32xbf16> to vector<16x8xbf16>
    %cst_48 = arith.constant dense<0.000000e+00> : vector<16x16xf32>
    %105 = tpu.matmul %103, %104, %cst_48 {dimension_numbers = #tpu.dot_dimension_numbers<[1], [1], [0], [0], [0, 0, 1, 0], [], []>} : vector<16x8xbf16>, vector<16x8xbf16>, vector<16x16xf32> -> vector<16x16xf32>
    %cst_49 = arith.constant 0.353553385 : f32
    %106 = vector.broadcast %cst_49 : f32 to vector<16x16xf32>
    %107 = arith.mulf %105, %106 : vector<16x16xf32>
    %cst_50 = arith.constant dense<0xFF800000> : vector<16xf32>
    %108 = vector.multi_reduction <maximumf>, %107, %cst_50 [1] : vector<16x16xf32> to vector<16xf32>
    %109 = vector.shape_cast %108 : vector<16xf32> to vector<16x1xf32>
    %110 = vector.broadcast %109 : vector<16x1xf32> to vector<16x16xf32>
    %111 = arith.subf %107, %110 : vector<16x16xf32>
    %112 = math.exp %111 : vector<16x16xf32>
    %cst_51 = arith.constant dense<0.000000e+00> : vector<16xf32>
    %113 = vector.multi_reduction <add>, %112, %cst_51 [1] : vector<16x16xf32> to vector<16xf32>
    %114 = vector.shape_cast %113 : vector<16xf32> to vector<16x1xf32>
    %115 = tpu.reciprocal %114 {approx = true} : vector<16x1xf32> -> vector<16x1xf32>
    %116 = vector.broadcast %115 : vector<16x1xf32> to vector<16x16xf32>
    %117 = arith.mulf %112, %116 : vector<16x16xf32>
    %118 = arith.truncf %117 : vector<16x16xf32> to vector<16x16xbf16>
    %119 = vector.extract_strided_slice %33 {offsets = [0, 24], sizes = [16, 8], strides = [1, 1]} : vector<16x32xbf16> to vector<16x8xbf16>
    %cst_52 = arith.constant dense<0.000000e+00> : vector<16x8xf32>
    %120 = tpu.matmul %118, %119, %cst_52 {dimension_numbers = #tpu.dot_dimension_numbers<[1], [0], [0], [1], [0, 0, 1, 1], [], []>} : vector<16x16xbf16>, vector<16x8xbf16>, vector<16x8xf32> -> vector<16x8xf32>
    %121 = arith.truncf %120 : vector<16x8xf32> to vector<16x8xbf16>
    %122 = vector.extract_strided_slice %35 {offsets = [24, 0], sizes = [8, 32], strides = [1, 1]} : vector<32x32xbf16> to vector<8x32xbf16>
    %cst_53 = arith.constant dense<0.000000e+00> : vector<16x32xf32>
    %123 = tpu.matmul %121, %122, %cst_53 {dimension_numbers = #tpu.dot_dimension_numbers<[1], [0], [0], [1], [0, 0, 1, 1], [], []>} : vector<16x8xbf16>, vector<8x32xbf16>, vector<16x32xf32> -> vector<16x32xf32>
    %124 = arith.addf %102, %123 : vector<16x32xf32>
    %c0_54 = arith.constant 0 : index
    %c0_55 = arith.constant 0 : index
    %c0_56 = arith.constant 0 : index
    %125 = vector.load %arg11[%c0_54, %c0_55, %c0_56] : memref<1x1x32xf32, #tpu.memory_space<vmem>>, vector<1x1x32xf32>
    %126 = vector.shape_cast %125 : vector<1x1x32xf32> to vector<1x32xf32>
    %127 = vector.broadcast %126 : vector<1x32xf32> to vector<16x32xf32>
    %128 = arith.addf %124, %127 : vector<16x32xf32>
    %129 = arith.addf %4, %128 : vector<16x32xf32>
    %cst_57 = arith.constant dense<0.000000e+00> : vector<16xf32>
    %130 = vector.multi_reduction <add>, %129, %cst_57 [1] : vector<16x32xf32> to vector<16xf32>
    %131 = vector.shape_cast %130 : vector<16xf32> to vector<16x1xf32>
    %cst_58 = arith.constant 3.200000e+01 : f32
    %132 = vector.broadcast %cst_58 : f32 to vector<16x1xf32>
    %133 = arith.divf %131, %132 : vector<16x1xf32>
    %134 = vector.broadcast %133 : vector<16x1xf32> to vector<16x32xf32>
    %135 = arith.subf %129, %134 : vector<16x32xf32>
    %136 = arith.mulf %135, %135 : vector<16x32xf32>
    %cst_59 = arith.constant dense<0.000000e+00> : vector<16xf32>
    %137 = vector.multi_reduction <add>, %136, %cst_59 [1] : vector<16x32xf32> to vector<16xf32>
    %138 = vector.shape_cast %137 : vector<16xf32> to vector<16x1xf32>
    %cst_60 = arith.constant 3.200000e+01 : f32
    %139 = vector.broadcast %cst_60 : f32 to vector<16x1xf32>
    %140 = arith.divf %138, %139 : vector<16x1xf32>
    %141 = vector.broadcast %133 : vector<16x1xf32> to vector<16x32xf32>
    %142 = arith.subf %129, %141 : vector<16x32xf32>
    %cst_61 = arith.constant 9.99999974E-6 : f32
    %143 = vector.broadcast %cst_61 : f32 to vector<16x1xf32>
    %144 = arith.addf %140, %143 : vector<16x1xf32>
    %145 = math.rsqrt %144 : vector<16x1xf32>
    %146 = vector.broadcast %145 : vector<16x1xf32> to vector<16x32xf32>
    %147 = arith.mulf %142, %146 : vector<16x32xf32>
    %c0_62 = arith.constant 0 : index
    %c0_63 = arith.constant 0 : index
    %c0_64 = arith.constant 0 : index
    %148 = vector.load %arg12[%c0_62, %c0_63, %c0_64] : memref<1x1x32xf32, #tpu.memory_space<vmem>>, vector<1x1x32xf32>
    %149 = vector.shape_cast %148 : vector<1x1x32xf32> to vector<1x32xf32>
    %150 = vector.broadcast %149 : vector<1x32xf32> to vector<16x32xf32>
    %151 = arith.mulf %147, %150 : vector<16x32xf32>
    %c0_65 = arith.constant 0 : index
    %c0_66 = arith.constant 0 : index
    %c0_67 = arith.constant 0 : index
    %152 = vector.load %arg13[%c0_65, %c0_66, %c0_67] : memref<1x1x32xf32, #tpu.memory_space<vmem>>, vector<1x1x32xf32>
    %153 = vector.shape_cast %152 : vector<1x1x32xf32> to vector<1x32xf32>
    %154 = vector.broadcast %153 : vector<1x32xf32> to vector<16x32xf32>
    %155 = arith.addf %151, %154 : vector<16x32xf32>
    %156 = arith.truncf %155 : vector<16x32xf32> to vector<16x32xbf16>
    %c0_68 = arith.constant 0 : index
    %c0_69 = arith.constant 0 : index
    %c0_70 = arith.constant 0 : index
    %157 = vector.load %arg14[%c0_68, %c0_69, %c0_70] : memref<1x32x64xbf16, #tpu.memory_space<vmem>>, vector<1x32x64xbf16>
    %158 = vector.shape_cast %157 : vector<1x32x64xbf16> to vector<32x64xbf16>
    %cst_71 = arith.constant dense<0.000000e+00> : vector<16x64xf32>
    %159 = tpu.matmul %156, %158, %cst_71 {dimension_numbers = #tpu.dot_dimension_numbers<[1], [0], [0], [1], [0, 0, 1, 1], [], []>} : vector<16x32xbf16>, vector<32x64xbf16>, vector<16x64xf32> -> vector<16x64xf32>
    %c0_72 = arith.constant 0 : index
    %c0_73 = arith.constant 0 : index
    %c0_74 = arith.constant 0 : index
    %160 = vector.load %arg15[%c0_72, %c0_73, %c0_74] : memref<1x1x64xf32, #tpu.memory_space<vmem>>, vector<1x1x64xf32>
    %161 = vector.shape_cast %160 : vector<1x1x64xf32> to vector<1x64xf32>
    %162 = vector.broadcast %161 : vector<1x64xf32> to vector<16x64xf32>
    %163 = arith.addf %159, %162 : vector<16x64xf32>
    %cst_75 = arith.constant 0.000000e+00 : f32
    %164 = vector.broadcast %cst_75 : f32 to vector<16x64xf32>
    %165 = arith.maximumf %163, %164 : vector<16x64xf32>
    %166 = arith.truncf %165 : vector<16x64xf32> to vector<16x64xbf16>
    %c0_76 = arith.constant 0 : index
    %c0_77 = arith.constant 0 : index
    %c0_78 = arith.constant 0 : index
    %167 = vector.load %arg16[%c0_76, %c0_77, %c0_78] : memref<1x64x32xbf16, #tpu.memory_space<vmem>>, vector<1x64x32xbf16>
    %168 = vector.shape_cast %167 : vector<1x64x32xbf16> to vector<64x32xbf16>
    %cst_79 = arith.constant dense<0.000000e+00> : vector<16x32xf32>
    %169 = tpu.matmul %166, %168, %cst_79 {dimension_numbers = #tpu.dot_dimension_numbers<[1], [0], [0], [1], [0, 0, 1, 1], [], []>} : vector<16x64xbf16>, vector<64x32xbf16>, vector<16x32xf32> -> vector<16x32xf32>
    %c0_80 = arith.constant 0 : index
    %c0_81 = arith.constant 0 : index
    %c0_82 = arith.constant 0 : index
    %170 = vector.load %arg17[%c0_80, %c0_81, %c0_82] : memref<1x1x32xf32, #tpu.memory_space<vmem>>, vector<1x1x32xf32>
    %171 = vector.shape_cast %170 : vector<1x1x32xf32> to vector<1x32xf32>
    %172 = vector.broadcast %171 : vector<1x32xf32> to vector<16x32xf32>
    %173 = arith.addf %169, %172 : vector<16x32xf32>
    %174 = arith.addf %155, %173 : vector<16x32xf32>
    %cst_83 = arith.constant dense<0.000000e+00> : vector<16xf32>
    %175 = vector.multi_reduction <add>, %174, %cst_83 [1] : vector<16x32xf32> to vector<16xf32>
    %176 = vector.shape_cast %175 : vector<16xf32> to vector<16x1xf32>
    %cst_84 = arith.constant 3.200000e+01 : f32
    %177 = vector.broadcast %cst_84 : f32 to vector<16x1xf32>
    %178 = arith.divf %176, %177 : vector<16x1xf32>
    %179 = vector.broadcast %178 : vector<16x1xf32> to vector<16x32xf32>
    %180 = arith.subf %174, %179 : vector<16x32xf32>
    %181 = arith.mulf %180, %180 : vector<16x32xf32>
    %cst_85 = arith.constant dense<0.000000e+00> : vector<16xf32>
    %182 = vector.multi_reduction <add>, %181, %cst_85 [1] : vector<16x32xf32> to vector<16xf32>
    %183 = vector.shape_cast %182 : vector<16xf32> to vector<16x1xf32>
    %cst_86 = arith.constant 3.200000e+01 : f32
    %184 = vector.broadcast %cst_86 : f32 to vector<16x1xf32>
    %185 = arith.divf %183, %184 : vector<16x1xf32>
    %186 = vector.broadcast %178 : vector<16x1xf32> to vector<16x32xf32>
    %187 = arith.subf %174, %186 : vector<16x32xf32>
    %cst_87 = arith.constant 9.99999974E-6 : f32
    %188 = vector.broadcast %cst_87 : f32 to vector<16x1xf32>
    %189 = arith.addf %185, %188 : vector<16x1xf32>
    %190 = math.rsqrt %189 : vector<16x1xf32>
    %191 = vector.broadcast %190 : vector<16x1xf32> to vector<16x32xf32>
    %192 = arith.mulf %187, %191 : vector<16x32xf32>
    %c0_88 = arith.constant 0 : index
    %c0_89 = arith.constant 0 : index
    %c0_90 = arith.constant 0 : index
    %193 = vector.load %arg18[%c0_88, %c0_89, %c0_90] : memref<1x1x32xf32, #tpu.memory_space<vmem>>, vector<1x1x32xf32>
    %194 = vector.shape_cast %193 : vector<1x1x32xf32> to vector<1x32xf32>
    %195 = vector.broadcast %194 : vector<1x32xf32> to vector<16x32xf32>
    %196 = arith.mulf %192, %195 : vector<16x32xf32>
    %c0_91 = arith.constant 0 : index
    %c0_92 = arith.constant 0 : index
    %c0_93 = arith.constant 0 : index
    %197 = vector.load %arg19[%c0_91, %c0_92, %c0_93] : memref<1x1x32xf32, #tpu.memory_space<vmem>>, vector<1x1x32xf32>
    %198 = vector.shape_cast %197 : vector<1x1x32xf32> to vector<1x32xf32>
    %199 = vector.broadcast %198 : vector<1x32xf32> to vector<16x32xf32>
    %200 = arith.addf %196, %199 : vector<16x32xf32>
    %c0_94 = arith.constant 0 : index
    %c0_95 = arith.constant 0 : index
    %c0_96 = arith.constant 0 : index
    %201 = vector.load %arg20[%c0_94, %c0_95, %c0_96] : memref<1x16x32xf32, #tpu.memory_space<vmem>>, vector<1x16x32xf32>
    %202 = vector.shape_cast %201 : vector<1x16x32xf32> to vector<16x32xf32>
    %203 = vector.shape_cast %200 : vector<16x32xf32> to vector<1x16x32xf32>
    tpu.vector_store %arg20[%c0_94, %c0_95, %c0_96], %203 {strides = array<i32>} : memref<1x16x32xf32, #tpu.memory_space<vmem>>, vector<1x16x32xf32>,
    return
  }
  func.func @transform_0(%arg0: i32, %arg1: i32) -> (i32, i32, i32) {
    %c0_i32 = arith.constant 0 : i32
    %c0_i32_0 = arith.constant 0 : i32
    %c0_i32_1 = arith.constant 0 : i32
    return %arg0, %c0_i32, %c0_i32_0 : i32, i32, i32
  }
  func.func @transform_1(%arg0: i32, %arg1: i32) -> (i32, i32, i32) {
    %c0_i32 = arith.constant 0 : i32
    %c0_i32_0 = arith.constant 0 : i32
    %c0_i32_1 = arith.constant 0 : i32
    return %arg0, %c0_i32, %c0_i32_0 : i32, i32, i32
  }
  func.func @transform_2(%arg0: i32, %arg1: i32) -> (i32, i32, i32) {
    %c0_i32 = arith.constant 0 : i32
    %c0_i32_0 = arith.constant 0 : i32
    %c0_i32_1 = arith.constant 0 : i32
    return %arg1, %c0_i32, %c0_i32_0 : i32, i32, i32
  }
  func.func @transform_3(%arg0: i32, %arg1: i32) -> (i32, i32, i32) {
    %c0_i32 = arith.constant 0 : i32
    %c0_i32_0 = arith.constant 0 : i32
    %c0_i32_1 = arith.constant 0 : i32
    return %arg1, %c0_i32, %c0_i32_0 : i32, i32, i32
  }
  func.func @transform_4(%arg0: i32, %arg1: i32) -> (i32, i32, i32) {
    %c0_i32 = arith.constant 0 : i32
    %c0_i32_0 = arith.constant 0 : i32
    %c0_i32_1 = arith.constant 0 : i32
    return %arg1, %c0_i32, %c0_i32_0 : i32, i32, i32
  }
  func.func @transform_5(%arg0: i32, %arg1: i32) -> (i32, i32, i32) {
    %c0_i32 = arith.constant 0 : i32
    %c0_i32_0 = arith.constant 0 : i32
    %c0_i32_1 = arith.constant 0 : i32
    return %arg1, %c0_i32, %c0_i32_0 : i32, i32, i32
  }
  func.func @transform_6(%arg0: i32, %arg1: i32) -> (i32, i32, i32) {
    %c0_i32 = arith.constant 0 : i32
    %c0_i32_0 = arith.constant 0 : i32
    %c0_i32_1 = arith.constant 0 : i32
    return %arg1, %c0_i32, %c0_i32_0 : i32, i32, i32
  }
  func.func @transform_7(%arg0: i32, %arg1: i32) -> (i32, i32, i32) {
    %c0_i32 = arith.constant 0 : i32
    %c0_i32_0 = arith.constant 0 : i32
    %c0_i32_1 = arith.constant 0 : i32
    return %arg1, %c0_i32, %c0_i32_0 : i32, i32, i32
  }
  func.func @transform_8(%arg0: i32, %arg1: i32) -> (i32, i32, i32) {
    %c0_i32 = arith.constant 0 : i32
    %c0_i32_0 = arith.constant 0 : i32
    %c0_i32_1 = arith.constant 0 : i32
    return %arg1, %c0_i32, %c0_i32_0 : i32, i32, i32
  }
  func.func @transform_9(%arg0: i32, %arg1: i32) -> (i32, i32, i32) {
    %c0_i32 = arith.constant 0 : i32
    %c0_i32_0 = arith.constant 0 : i32
    %c0_i32_1 = arith.constant 0 : i32
    return %arg1, %c0_i32, %c0_i32_0 : i32, i32, i32
  }
  func.func @transform_10(%arg0: i32, %arg1: i32) -> (i32, i32, i32) {
    %c0_i32 = arith.constant 0 : i32
    %c0_i32_0 = arith.constant 0 : i32
    %c0_i32_1 = arith.constant 0 : i32
    return %arg1, %c0_i32, %c0_i32_0 : i32, i32, i32
  }
  func.func @transform_11(%arg0: i32, %arg1: i32) -> (i32, i32, i32) {
    %c0_i32 = arith.constant 0 : i32
    %c0_i32_0 = arith.constant 0 : i32
    %c0_i32_1 = arith.constant 0 : i32
    return %arg1, %c0_i32, %c0_i32_0 : i32, i32, i32
  }
  func.func @transform_12(%arg0: i32, %arg1: i32) -> (i32, i32, i32) {
    %c0_i32 = arith.constant 0 : i32
    %c0_i32_0 = arith.constant 0 : i32
    %c0_i32_1 = arith.constant 0 : i32
    return %arg1, %c0_i32, %c0_i32_0 : i32, i32, i32
  }
  func.func @transform_13(%arg0: i32, %arg1: i32) -> (i32, i32, i32) {
    %c0_i32 = arith.constant 0 : i32
    %c0_i32_0 = arith.constant 0 : i32
    %c0_i32_1 = arith.constant 0 : i32
    return %arg1, %c0_i32, %c0_i32_0 : i32, i32, i32
  }
  func.func @transform_14(%arg0: i32, %arg1: i32) -> (i32, i32, i32) {
    %c0_i32 = arith.constant 0 : i32
    %c0_i32_0 = arith.constant 0 : i32
    %c0_i32_1 = arith.constant 0 : i32
    return %arg1, %c0_i32, %c0_i32_0 : i32, i32, i32
  }
  func.func @transform_15(%arg0: i32, %arg1: i32) -> (i32, i32, i32) {
    %c0_i32 = arith.constant 0 : i32
    %c0_i32_0 = arith.constant 0 : i32
    %c0_i32_1 = arith.constant 0 : i32
    return %arg1, %c0_i32, %c0_i32_0 : i32, i32, i32
  }
  func.func @transform_16(%arg0: i32, %arg1: i32) -> (i32, i32, i32) {
    %c0_i32 = arith.constant 0 : i32
    %c0_i32_0 = arith.constant 0 : i32
    %c0_i32_1 = arith.constant 0 : i32
    return %arg1, %c0_i32, %c0_i32_0 : i32, i32, i32
  }
  func.func @transform_17(%arg0: i32, %arg1: i32) -> (i32, i32, i32) {
    %c0_i32 = arith.constant 0 : i32
    %c0_i32_0 = arith.constant 0 : i32
    %c0_i32_1 = arith.constant 0 : i32
    return %arg1, %c0_i32, %c0_i32_0 : i32, i32, i32
  }
  func.func @transform_18(%arg0: i32, %arg1: i32) -> (i32, i32, i32) {
    %c0_i32 = arith.constant 0 : i32
    %c0_i32_0 = arith.constant 0 : i32
    %c0_i32_1 = arith.constant 0 : i32
    return %arg0, %c0_i32, %c0_i32_0 : i32, i32, i32
  }
}

</mosaic_0001>

<llo_original>
// kernel: tpu_custom_call.1
$region0: #{tpu_custom_call.1}
  #allocation0 [shape = 'u32[]', space=smem, size = 0x4, offset = 0x4, fixed_abs, tag = 'smem constant byte address 0x4 - core index']
  #allocation1 [shape = 'u32[144,128]{1,0:T(1,128)}', space=vmem, size = 0x12000, scoped, tag = 'internal scratch']
  %s0 = inlined_call_operand.vmem [shape: f32[2,16,32], index: 0, kind: input, shape index: {}]
  %s1 = inlined_call_operand.vmem [shape: f32[2,16,32], index: 1, kind: input, shape index: {}]
  %s2 = inlined_call_operand.vmem [shape: bf16[2,32,32], index: 2, kind: input, shape index: {}]
  %s3 = inlined_call_operand.vmem [shape: f32[2,1,32], index: 3, kind: input, shape index: {}]
  %s4 = inlined_call_operand.hbm [shape: bf16[2,32,32], index: 4, kind: input, shape index: {}]
  %s5 = inlined_call_operand.vmem [shape: f32[2,1,32], index: 5, kind: input, shape index: {}]
  %s6 = inlined_call_operand.hbm [shape: bf16[2,32,32], index: 6, kind: input, shape index: {}]
  %s7 = inlined_call_operand.vmem [shape: f32[2,1,32], index: 7, kind: input, shape index: {}]
  %s8 = inlined_call_operand.hbm [shape: bf16[2,32,32], index: 8, kind: input, shape index: {}]
  %s9 = inlined_call_operand.vmem [shape: f32[2,1,32], index: 9, kind: input, shape index: {}]
  %s10 = inlined_call_operand.vmem [shape: f32[2,1,32], index: 10, kind: input, shape index: {}]
  %s11 = inlined_call_operand.vmem [shape: f32[2,1,32], index: 11, kind: input, shape index: {}]
  %s12 = inlined_call_operand.hbm [shape: bf16[2,32,64], index: 12, kind: input, shape index: {}]
  %s13 = inlined_call_operand.vmem [shape: f32[2,1,64], index: 13, kind: input, shape index: {}]
  %s14 = inlined_call_operand.vmem [shape: bf16[2,64,32], index: 14, kind: input, shape index: {}]
  %s15 = inlined_call_operand.vmem [shape: f32[2,1,32], index: 15, kind: input, shape index: {}]
  %s16 = inlined_call_operand.vmem [shape: f32[2,1,32], index: 16, kind: input, shape index: {}]
  %s17 = inlined_call_operand.vmem [shape: f32[2,1,32], index: 17, kind: input, shape index: {}]
  %s18 = inlined_call_operand.hbm [shape: f32[2,16,32], index: 18, kind: output, shape index: {}]
  %s19 = sld [smem:[#allocation0]]
  $region125: #{tpu_custom_call.1} parent=0
    _
  %s21 = ssub.s32 1, %s19
  %s22 = scalar_select 0, %s21, %s19
  $region1: #{tpu_custom_call.1} parent=0
    #allocation2 [shape = 'u8[16384]{0}', space=vmem, size = 0x4000, scoped, tag = 'input window, operand 4']
    #allocation3 [shape = 's32[2]{0}', space=sflag, size = 0x8, scoped, tag = 'scoped memory for tpu_custom_call.1']
    #allocation4 [shape = 's32[2]{0}', space=sflag, size = 0x8, scoped, tag = 'scoped memory for tpu_custom_call.1']
    #allocation5 [shape = 'u8[16384]{0}', space=vmem, size = 0x4000, scoped, tag = 'input window, operand 6']
    #allocation6 [shape = 's32[2]{0}', space=sflag, size = 0x8, scoped, tag = 'scoped memory for tpu_custom_call.1']
    #allocation7 [shape = 'u8[16384]{0}', space=vmem, size = 0x4000, scoped, tag = 'input window, operand 8']
    #allocation8 [shape = 'u8[16384]{0}', space=vmem, size = 0x4000, scoped, tag = 'input window, operand 12']
    #allocation9 [shape = 's32[2]{0}', space=sflag, size = 0x8, scoped, tag = 'scoped memory for tpu_custom_call.1']
    #allocation10 [shape = 'u8[16384]{0}', space=vmem, size = 0x4000, scoped, tag = 'output window, operand 0']
    %23 = vsyncpa [#allocation3], 0
    %s24 = scalar_lea.sflag [#allocation3], 1
    %25 = vsyncpa %s24, 0
    %26 = vsyncpa [#allocation6], 0
    %s27 = scalar_lea.sflag [#allocation6], 1
    %28 = vsyncpa %s27, 0
    %29 = vsyncpa [#allocation9], 0
    %s30 = scalar_lea.sflag [#allocation9], 1
    %31 = vsyncpa %s30, 0
    %32 = vsyncpa [#allocation4], 0
    %s33 = scalar_lea.sflag [#allocation4], 1
    %34 = vsyncpa %s33, 0
    loop: start=0, step=1, limit=6
    $region2: #{tpu_custom_call.1} parent=1 // loop_pre_header
      _
    $region3: #{tpu_custom_call.1} parent=1 // loop_header
      %s36 = sphi 0, %s40
      %p37 = scmp.ge.s32.totalorder %s36, 6
      %s43 = sphi 0, %s55
      %s44 = sphi 0, %s51
      %s45 = sphi 0, %s43
      %s46 = sphi 0, %s44
      %s47 = sphi 0, %s45
      %s48 = sphi 0, %s46
      %s58 = sphi 0, %s60
      %s61 = sphi 0, %s58
      %s62 = sphi 0, %s61
      %s78 = sphi 0, %s62
      %s84 = sphi 0, %s86
      %s87 = sphi 0, %s84
      %s88 = sphi 0, %s87
      %s104 = sphi 0, %s88
      %s110 = sphi 0, %s112
      %s113 = sphi 0, %s110
      %s114 = sphi 0, %s113
      %s130 = sphi 0, %s114
      %s136 = sphi 0, %s138
      %s139 = sphi 0, %s136
      %s140 = sphi 0, %s139
      %s156 = sphi 0, %s140
      %s162 = sphi 0, %s164
      %s165 = sphi 0, %s162
      %s166 = sphi 0, %s165
      %s182 = sphi 0, %s166
      %s188 = sphi 0, %s190
      %s191 = sphi 0, %s188
      %s192 = sphi 0, %s191
      %s208 = sphi 0, %s192
      %s214 = sphi 0, %s216
      %s217 = sphi 0, %s214
      %s218 = sphi 0, %s217
      %s234 = sphi 0, %s218
      %s240 = sphi 0, %s242
      %s243 = sphi 0, %s240
      %s244 = sphi 0, %s243
      %s260 = sphi 0, %s244
      %s266 = sphi 0, %s268
      %s269 = sphi 0, %s266
      %s270 = sphi 0, %s269
      %s286 = sphi 0, %s270
      %s292 = sphi 0, %s294
      %s295 = sphi 0, %s292
      %s296 = sphi 0, %s295
      %s312 = sphi 0, %s296
      %s318 = sphi 0, %s320
      %s321 = sphi 0, %s318
      %s322 = sphi 0, %s321
      %s338 = sphi 0, %s322
      %s344 = sphi 0, %s346
      %s347 = sphi 0, %s344
      %s348 = sphi 0, %s347
      %s364 = sphi 0, %s348
      %s370 = sphi 0, %s372
      %s373 = sphi 0, %s370
      %s374 = sphi 0, %s373
      %s390 = sphi 0, %s374
      %s396 = sphi 0, %s398
      %s399 = sphi 0, %s396
      %s400 = sphi 0, %s399
      %s416 = sphi 0, %s400
      %s422 = sphi 0, %s424
      %s425 = sphi 0, %s422
      %s426 = sphi 0, %s425
      %s442 = sphi 0, %s426
      %s448 = sphi 0, %s450
      %s451 = sphi 0, %s448
      %s452 = sphi 0, %s451
      %s468 = sphi 0, %s452
      %s474 = sphi 0, %s476
      %s477 = sphi 0, %s474
      %s478 = sphi 0, %s477
      %s494 = sphi 0, %s478
      %s500 = sphi 0, %s502
      %s503 = sphi 0, %s500
      %s504 = sphi 0, %s503
      %s520 = sphi 0, %s504
      %s526 = sphi 0, %s528
      %s529 = sphi 0, %s526
      %s530 = sphi 0, %s529
      %s546 = sphi 0, %s530
    $region4: #{tpu_custom_call.1} parent=1 // loop_header_branch
      %39 = sbr.rel (%p37) target = $region8
    $region5: #{tpu_custom_call.1} parent=1 // loop_body
      %s41 = ssub.s32 %s36, 1
      %s42 = ssub.s32 %s36, 2
      %s49 = sadd.s32 1, %s44
      %p50 = scmp.ge.s32.totalorder %s49, 2
      %s51 = scalar_select %p50, 0, %s49
      %s52 = sadd.s32 1, %s43
      %s53 = scalar_select %p50, %s52, %s43
      %p54 = scmp.ge.s32.totalorder %s53, 2
      %s55 = scalar_select %p54, 0, %s53
      %s56 = ssub.s32 %s43, %s55
      %p57 = scmp.eq.s32.totalorder %s56, 0
      %s59 = sadd.s32 %s58, 1
      %s60 = scalar_select %p57, %s58, %s59
      %p63 = pneg %p57
      %p64 = scmp.eq.s32.totalorder %s36, 3
      %p65 = por %p63, %p64
      %p66 = scmp.ne.s32.totalorder %s58, %s61
      %p67 = scmp.eq.s32.totalorder %s36, 0
      %p68 = por %p66, %p67
      %p69 = scmp.ne.s32.totalorder %s58, %s61
      %p70 = scmp.eq.s32.totalorder %s41, 3
      %p71 = por %p69, %p70
      %p72 = scmp.ne.s32.totalorder %s61, %s62
      %p73 = scmp.eq.s32.totalorder %s41, 0
      %p74 = por %p72, %p73
      %p75 = scmp.ne.s32.totalorder %s61, %s62
      %p76 = scmp.eq.s32.totalorder %s42, 3
      %p77 = por %p75, %p76
      %p79 = scmp.ne.s32.totalorder %s62, %s78
      %p80 = scmp.eq.s32.totalorder %s42, 0
      %p81 = por %p79, %p80
      %s82 = ssub.s32 %s43, %s55
      %p83 = scmp.eq.s32.totalorder %s82, 0
      %s85 = sadd.s32 %s84, 1
      %s86 = scalar_select %p83, %s84, %s85
      %p89 = pneg %p83
      %p90 = scmp.eq.s32.totalorder %s36, 3
      %p91 = por %p89, %p90
      %p92 = scmp.ne.s32.totalorder %s84, %s87
      %p93 = scmp.eq.s32.totalorder %s36, 0
      %p94 = por %p92, %p93
      %p95 = scmp.ne.s32.totalorder %s84, %s87
      %p96 = scmp.eq.s32.totalorder %s41, 3
      %p97 = por %p95, %p96
      %p98 = scmp.ne.s32.totalorder %s87, %s88
      %p99 = scmp.eq.s32.totalorder %s41, 0
      %p100 = por %p98, %p99
      %p101 = scmp.ne.s32.totalorder %s87, %s88
      %p102 = scmp.eq.s32.totalorder %s42, 3
      %p103 = por %p101, %p102
      %p105 = scmp.ne.s32.totalorder %s88, %s104
      %p106 = scmp.eq.s32.totalorder %s42, 0
      %p107 = por %p105, %p106
      %s108 = ssub.s32 %s44, %s51
      %p109 = scmp.eq.s32.totalorder %s108, 0
      %s111 = sadd.s32 %s110, 1
      %s112 = scalar_select %p109, %s110, %s111
      %p115 = pneg %p109
      %p116 = scmp.eq.s32.totalorder %s36, 3
      %p117 = por %p115, %p116
      %p118 = scmp.ne.s32.totalorder %s110, %s113
      %p119 = scmp.eq.s32.totalorder %s36, 0
      %p120 = por %p118, %p119
      %p121 = scmp.ne.s32.totalorder %s110, %s113
      %p122 = scmp.eq.s32.totalorder %s41, 3
      %p123 = por %p121, %p122
      %p124 = scmp.ne.s32.totalorder %s113, %s114
      %p125 = scmp.eq.s32.totalorder %s41, 0
      %p126 = por %p124, %p125
      %p127 = scmp.ne.s32.totalorder %s113, %s114
      %p128 = scmp.eq.s32.totalorder %s42, 3
      %p129 = por %p127, %p128
      %p131 = scmp.ne.s32.totalorder %s114, %s130
      %p132 = scmp.eq.s32.totalorder %s42, 0
      %p133 = por %p131, %p132
      %s134 = ssub.s32 %s44, %s51
      %p135 = scmp.eq.s32.totalorder %s134, 0
      %s137 = sadd.s32 %s136, 1
      %s138 = scalar_select %p135, %s136, %s137
      %p141 = pneg %p135
      %p142 = scmp.eq.s32.totalorder %s36, 3
      %p143 = por %p141, %p142
      %p144 = scmp.ne.s32.totalorder %s136, %s139
      %p145 = scmp.eq.s32.totalorder %s36, 0
      %p146 = por %p144, %p145
      %p147 = scmp.ne.s32.totalorder %s136, %s139
      %p148 = scmp.eq.s32.totalorder %s41, 3
      %p149 = por %p147, %p148
      %p150 = scmp.ne.s32.totalorder %s139, %s140
      %p151 = scmp.eq.s32.totalorder %s41, 0
      %p152 = por %p150, %p151
      %p153 = scmp.ne.s32.totalorder %s139, %s140
      %p154 = scmp.eq.s32.totalorder %s42, 3
      %p155 = por %p153, %p154
      %p157 = scmp.ne.s32.totalorder %s140, %s156
      %p158 = scmp.eq.s32.totalorder %s42, 0
      %p159 = por %p157, %p158
      %s160 = ssub.s32 %s44, %s51
      %p161 = scmp.eq.s32.totalorder %s160, 0
      %s163 = sadd.s32 %s162, 1
      %s164 = scalar_select %p161, %s162, %s163
      %p167 = pneg %p161
      %p168 = scmp.eq.s32.totalorder %s36, 3
      %p169 = por %p167, %p168
      %p170 = scmp.ne.s32.totalorder %s162, %s165
      %p171 = scmp.eq.s32.totalorder %s36, 0
      %p172 = por %p170, %p171
      %p173 = scmp.ne.s32.totalorder %s162, %s165
      %p174 = scmp.eq.s32.totalorder %s41, 3
      %p175 = por %p173, %p174
      %p176 = scmp.ne.s32.totalorder %s165, %s166
      %p177 = scmp.eq.s32.totalorder %s41, 0
      %p178 = por %p176, %p177
      %p179 = scmp.ne.s32.totalorder %s165, %s166
      %p180 = scmp.eq.s32.totalorder %s42, 3
      %p181 = por %p179, %p180
      %p183 = scmp.ne.s32.totalorder %s166, %s182
      %p184 = scmp.eq.s32.totalorder %s42, 0
      %p185 = por %p183, %p184
      %s186 = ssub.s32 %s44, %s51
      %p187 = scmp.eq.s32.totalorder %s186, 0
      %s189 = sadd.s32 %s188, 1
      %s190 = scalar_select %p187, %s188, %s189
      %p193 = pneg %p187
      %p194 = scmp.eq.s32.totalorder %s36, 3
      %p195 = por %p193, %p194
      %p196 = scmp.ne.s32.totalorder %s188, %s191
      %p197 = scmp.eq.s32.totalorder %s36, 0
      %p198 = por %p196, %p197
      %p199 = scmp.ne.s32.totalorder %s188, %s191
      %p200 = scmp.eq.s32.totalorder %s41, 3
      %p201 = por %p199, %p200
      %p202 = scmp.ne.s32.totalorder %s191, %s192
      %p203 = scmp.eq.s32.totalorder %s41, 0
      %p204 = por %p202, %p203
      %p205 = scmp.ne.s32.totalorder %s191, %s192
      %p206 = scmp.eq.s32.totalorder %s42, 3
      %p207 = por %p205, %p206
      %p209 = scmp.ne.s32.totalorder %s192, %s208
      %p210 = scmp.eq.s32.totalorder %s42, 0
      %p211 = por %p209, %p210
      %s212 = ssub.s32 %s44, %s51
      %p213 = scmp.eq.s32.totalorder %s212, 0
      %s215 = sadd.s32 %s214, 1
      %s216 = scalar_select %p213, %s214, %s215
      %p219 = pneg %p213
      %p220 = scmp.eq.s32.totalorder %s36, 3
      %p221 = por %p219, %p220
      %p222 = scmp.ne.s32.totalorder %s214, %s217
      %p223 = scmp.eq.s32.totalorder %s36, 0
      %p224 = por %p222, %p223
      %p225 = scmp.ne.s32.totalorder %s214, %s217
      %p226 = scmp.eq.s32.totalorder %s41, 3
      %p227 = por %p225, %p226
      %p228 = scmp.ne.s32.totalorder %s217, %s218
      %p229 = scmp.eq.s32.totalorder %s41, 0
      %p230 = por %p228, %p229
      %p231 = scmp.ne.s32.totalorder %s217, %s218
      %p232 = scmp.eq.s32.totalorder %s42, 3
      %p233 = por %p231, %p232
      %p235 = scmp.ne.s32.totalorder %s218, %s234
      %p236 = scmp.eq.s32.totalorder %s42, 0
      %p237 = por %p235, %p236
      %s238 = ssub.s32 %s44, %s51
      %p239 = scmp.eq.s32.totalorder %s238, 0
      %s241 = sadd.s32 %s240, 1
      %s242 = scalar_select %p239, %s240, %s241
      %p245 = pneg %p239
      %p246 = scmp.eq.s32.totalorder %s36, 3
      %p247 = por %p245, %p246
      %p248 = scmp.ne.s32.totalorder %s240, %s243
      %p249 = scmp.eq.s32.totalorder %s36, 0
      %p250 = por %p248, %p249
      %p251 = scmp.ne.s32.totalorder %s240, %s243
      %p252 = scmp.eq.s32.totalorder %s41, 3
      %p253 = por %p251, %p252
      %p254 = scmp.ne.s32.totalorder %s243, %s244
      %p255 = scmp.eq.s32.totalorder %s41, 0
      %p256 = por %p254, %p255
      %p257 = scmp.ne.s32.totalorder %s243, %s244
      %p258 = scmp.eq.s32.totalorder %s42, 3
      %p259 = por %p257, %p258
      %p261 = scmp.ne.s32.totalorder %s244, %s260
      %p262 = scmp.eq.s32.totalorder %s42, 0
      %p263 = por %p261, %p262
      %s264 = ssub.s32 %s44, %s51
      %p265 = scmp.eq.s32.totalorder %s264, 0
      %s267 = sadd.s32 %s266, 1
      %s268 = scalar_select %p265, %s266, %s267
      %p271 = pneg %p265
      %p272 = scmp.eq.s32.totalorder %s36, 3
      %p273 = por %p271, %p272
      %p274 = scmp.ne.s32.totalorder %s266, %s269
      %p275 = scmp.eq.s32.totalorder %s36, 0
      %p276 = por %p274, %p275
      %p277 = scmp.ne.s32.totalorder %s266, %s269
      %p278 = scmp.eq.s32.totalorder %s41, 3
      %p279 = por %p277, %p278
      %p280 = scmp.ne.s32.totalorder %s269, %s270
      %p281 = scmp.eq.s32.totalorder %s41, 0
      %p282 = por %p280, %p281
      %p283 = scmp.ne.s32.totalorder %s269, %s270
      %p284 = scmp.eq.s32.totalorder %s42, 3
      %p285 = por %p283, %p284
      %p287 = scmp.ne.s32.totalorder %s270, %s286
      %p288 = scmp.eq.s32.totalorder %s42, 0
      %p289 = por %p287, %p288
      %s290 = ssub.s32 %s44, %s51
      %p291 = scmp.eq.s32.totalorder %s290, 0
      %s293 = sadd.s32 %s292, 1
      %s294 = scalar_select %p291, %s292, %s293
      %p297 = pneg %p291
      %p298 = scmp.eq.s32.totalorder %s36, 3
      %p299 = por %p297, %p298
      %p300 = scmp.ne.s32.totalorder %s292, %s295
      %p301 = scmp.eq.s32.totalorder %s36, 0
      %p302 = por %p300, %p301
      %p303 = scmp.ne.s32.totalorder %s292, %s295
      %p304 = scmp.eq.s32.totalorder %s41, 3
      %p305 = por %p303, %p304
      %p306 = scmp.ne.s32.totalorder %s295, %s296
      %p307 = scmp.eq.s32.totalorder %s41, 0
      %p308 = por %p306, %p307
      %p309 = scmp.ne.s32.totalorder %s295, %s296
      %p310 = scmp.eq.s32.totalorder %s42, 3
      %p311 = por %p309, %p310
      %p313 = scmp.ne.s32.totalorder %s296, %s312
      %p314 = scmp.eq.s32.totalorder %s42, 0
      %p315 = por %p313, %p314
      %s316 = ssub.s32 %s44, %s51
      %p317 = scmp.eq.s32.totalorder %s316, 0
      %s319 = sadd.s32 %s318, 1
      %s320 = scalar_select %p317, %s318, %s319
      %p323 = pneg %p317
      %p324 = scmp.eq.s32.totalorder %s36, 3
      %p325 = por %p323, %p324
      %p326 = scmp.ne.s32.totalorder %s318, %s321
      %p327 = scmp.eq.s32.totalorder %s36, 0
      %p328 = por %p326, %p327
      %p329 = scmp.ne.s32.totalorder %s318, %s321
      %p330 = scmp.eq.s32.totalorder %s41, 3
      %p331 = por %p329, %p330
      %p332 = scmp.ne.s32.totalorder %s321, %s322
      %p333 = scmp.eq.s32.totalorder %s41, 0
      %p334 = por %p332, %p333
      %p335 = scmp.ne.s32.totalorder %s321, %s322
      %p336 = scmp.eq.s32.totalorder %s42, 3
      %p337 = por %p335, %p336
      %p339 = scmp.ne.s32.totalorder %s322, %s338
      %p340 = scmp.eq.s32.totalorder %s42, 0
      %p341 = por %p339, %p340
      %s342 = ssub.s32 %s44, %s51
      %p343 = scmp.eq.s32.totalorder %s342, 0
      %s345 = sadd.s32 %s344, 1
      %s346 = scalar_select %p343, %s344, %s345
      %p349 = pneg %p343
      %p350 = scmp.eq.s32.totalorder %s36, 3
      %p351 = por %p349, %p350
      %p352 = scmp.ne.s32.totalorder %s344, %s347
      %p353 = scmp.eq.s32.totalorder %s36, 0
      %p354 = por %p352, %p353
      %p355 = scmp.ne.s32.totalorder %s344, %s347
      %p356 = scmp.eq.s32.totalorder %s41, 3
      %p357 = por %p355, %p356
      %p358 = scmp.ne.s32.totalorder %s347, %s348
      %p359 = scmp.eq.s32.totalorder %s41, 0
      %p360 = por %p358, %p359
      %p361 = scmp.ne.s32.totalorder %s347, %s348
      %p362 = scmp.eq.s32.totalorder %s42, 3
      %p363 = por %p361, %p362
      %p365 = scmp.ne.s32.totalorder %s348, %s364
      %p366 = scmp.eq.s32.totalorder %s42, 0
      %p367 = por %p365, %p366
      %s368 = ssub.s32 %s44, %s51
      %p369 = scmp.eq.s32.totalorder %s368, 0
      %s371 = sadd.s32 %s370, 1
      %s372 = scalar_select %p369, %s370, %s371
      %p375 = pneg %p369
      %p376 = scmp.eq.s32.totalorder %s36, 3
      %p377 = por %p375, %p376
      %p378 = scmp.ne.s32.totalorder %s370, %s373
      %p379 = scmp.eq.s32.totalorder %s36, 0
      %p380 = por %p378, %p379
      %p381 = scmp.ne.s32.totalorder %s370, %s373
      %p382 = scmp.eq.s32.totalorder %s41, 3
      %p383 = por %p381, %p382
      %p384 = scmp.ne.s32.totalorder %s373, %s374
      %p385 = scmp.eq.s32.totalorder %s41, 0
      %p386 = por %p384, %p385
      %p387 = scmp.ne.s32.totalorder %s373, %s374
      %p388 = scmp.eq.s32.totalorder %s42, 3
      %p389 = por %p387, %p388
      %p391 = scmp.ne.s32.totalorder %s374, %s390
      %p392 = scmp.eq.s32.totalorder %s42, 0
      %p393 = por %p391, %p392
      %s394 = ssub.s32 %s44, %s51
      %p395 = scmp.eq.s32.totalorder %s394, 0
      %s397 = sadd.s32 %s396, 1
      %s398 = scalar_select %p395, %s396, %s397
      %p401 = pneg %p395
      %p402 = scmp.eq.s32.totalorder %s36, 3
      %p403 = por %p401, %p402
      %p404 = scmp.ne.s32.totalorder %s396, %s399
      %p405 = scmp.eq.s32.totalorder %s36, 0
      %p406 = por %p404, %p405
      %p407 = scmp.ne.s32.totalorder %s396, %s399
      %p408 = scmp.eq.s32.totalorder %s41, 3
      %p409 = por %p407, %p408
      %p410 = scmp.ne.s32.totalorder %s399, %s400
      %p411 = scmp.eq.s32.totalorder %s41, 0
      %p412 = por %p410, %p411
      %p413 = scmp.ne.s32.totalorder %s399, %s400
      %p414 = scmp.eq.s32.totalorder %s42, 3
      %p415 = por %p413, %p414
      %p417 = scmp.ne.s32.totalorder %s400, %s416
      %p418 = scmp.eq.s32.totalorder %s42, 0
      %p419 = por %p417, %p418
      %s420 = ssub.s32 %s44, %s51
      %p421 = scmp.eq.s32.totalorder %s420, 0
      %s423 = sadd.s32 %s422, 1
      %s424 = scalar_select %p421, %s422, %s423
      %p427 = pneg %p421
      %p428 = scmp.eq.s32.totalorder %s36, 3
      %p429 = por %p427, %p428
      %p430 = scmp.ne.s32.totalorder %s422, %s425
      %p431 = scmp.eq.s32.totalorder %s36, 0
      %p432 = por %p430, %p431
      %p433 = scmp.ne.s32.totalorder %s422, %s425
      %p434 = scmp.eq.s32.totalorder %s41, 3
      %p435 = por %p433, %p434
      %p436 = scmp.ne.s32.totalorder %s425, %s426
      %p437 = scmp.eq.s32.totalorder %s41, 0
      %p438 = por %p436, %p437
      %p439 = scmp.ne.s32.totalorder %s425, %s426
      %p440 = scmp.eq.s32.totalorder %s42, 3
      %p441 = por %p439, %p440
      %p443 = scmp.ne.s32.totalorder %s426, %s442
      %p444 = scmp.eq.s32.totalorder %s42, 0
      %p445 = por %p443, %p444
      %s446 = ssub.s32 %s44, %s51
      %p447 = scmp.eq.s32.totalorder %s446, 0
      %s449 = sadd.s32 %s448, 1
      %s450 = scalar_select %p447, %s448, %s449
      %p453 = pneg %p447
      %p454 = scmp.eq.s32.totalorder %s36, 3
      %p455 = por %p453, %p454
      %p456 = scmp.ne.s32.totalorder %s448, %s451
      %p457 = scmp.eq.s32.totalorder %s36, 0
      %p458 = por %p456, %p457
      %p459 = scmp.ne.s32.totalorder %s448, %s451
      %p460 = scmp.eq.s32.totalorder %s41, 3
      %p461 = por %p459, %p460
      %p462 = scmp.ne.s32.totalorder %s451, %s452
      %p463 = scmp.eq.s32.totalorder %s41, 0
      %p464 = por %p462, %p463
      %p465 = scmp.ne.s32.totalorder %s451, %s452
      %p466 = scmp.eq.s32.totalorder %s42, 3
      %p467 = por %p465, %p466
      %p469 = scmp.ne.s32.totalorder %s452, %s468
      %p470 = scmp.eq.s32.totalorder %s42, 0
      %p471 = por %p469, %p470
      %s472 = ssub.s32 %s44, %s51
      %p473 = scmp.eq.s32.totalorder %s472, 0
      %s475 = sadd.s32 %s474, 1
      %s476 = scalar_select %p473, %s474, %s475
      %p479 = pneg %p473
      %p480 = scmp.eq.s32.totalorder %s36, 3
      %p481 = por %p479, %p480
      %p482 = scmp.ne.s32.totalorder %s474, %s477
      %p483 = scmp.eq.s32.totalorder %s36, 0
      %p484 = por %p482, %p483
      %p485 = scmp.ne.s32.totalorder %s474, %s477
      %p486 = scmp.eq.s32.totalorder %s41, 3
      %p487 = por %p485, %p486
      %p488 = scmp.ne.s32.totalorder %s477, %s478
      %p489 = scmp.eq.s32.totalorder %s41, 0
      %p490 = por %p488, %p489
      %p491 = scmp.ne.s32.totalorder %s477, %s478
      %p492 = scmp.eq.s32.totalorder %s42, 3
      %p493 = por %p491, %p492
      %p495 = scmp.ne.s32.totalorder %s478, %s494
      %p496 = scmp.eq.s32.totalorder %s42, 0
      %p497 = por %p495, %p496
      %s498 = ssub.s32 %s44, %s51
      %p499 = scmp.eq.s32.totalorder %s498, 0
      %s501 = sadd.s32 %s500, 1
      %s502 = scalar_select %p499, %s500, %s501
      %p505 = pneg %p499
      %p506 = scmp.eq.s32.totalorder %s36, 3
      %p507 = por %p505, %p506
      %p508 = scmp.ne.s32.totalorder %s500, %s503
      %p509 = scmp.eq.s32.totalorder %s36, 0
      %p510 = por %p508, %p509
      %p511 = scmp.ne.s32.totalorder %s500, %s503
      %p512 = scmp.eq.s32.totalorder %s41, 3
      %p513 = por %p511, %p512
      %p514 = scmp.ne.s32.totalorder %s503, %s504
      %p515 = scmp.eq.s32.totalorder %s41, 0
      %p516 = por %p514, %p515
      %p517 = scmp.ne.s32.totalorder %s503, %s504
      %p518 = scmp.eq.s32.totalorder %s42, 3
      %p519 = por %p517, %p518
      %p521 = scmp.ne.s32.totalorder %s504, %s520
      %p522 = scmp.eq.s32.totalorder %s42, 0
      %p523 = por %p521, %p522
      %s524 = ssub.s32 %s43, %s55
      %p525 = scmp.eq.s32.totalorder %s524, 0
      %s527 = sadd.s32 %s526, 1
      %s528 = scalar_select %p525, %s526, %s527
      %p531 = pneg %p525
      %p532 = scmp.eq.s32.totalorder %s36, 3
      %p533 = por %p531, %p532
      %p534 = scmp.ne.s32.totalorder %s526, %s529
      %p535 = scmp.eq.s32.totalorder %s36, 0
      %p536 = por %p534, %p535
      %p537 = scmp.ne.s32.totalorder %s526, %s529
      %p538 = scmp.eq.s32.totalorder %s41, 3
      %p539 = por %p537, %p538
      %p540 = scmp.ne.s32.totalorder %s529, %s530
      %p541 = scmp.eq.s32.totalorder %s41, 0
      %p542 = por %p540, %p541
      %p543 = scmp.ne.s32.totalorder %s529, %s530
      %p544 = scmp.eq.s32.totalorder %s42, 3
      %p545 = por %p543, %p544
      %p547 = scmp.ne.s32.totalorder %s530, %s546
      %p548 = scmp.eq.s32.totalorder %s42, 0
      %p549 = por %p547, %p548
      %p550 = scmp.le.s32.totalorder 1, %s36
      %p551 = scmp.lt.s32.totalorder %s36, 5
      %p552 = pnand %p550, %p551
      %p553 = pneg %p552
      // Predicated region
      $region9: #{tpu_custom_call.1} parent=5 // pred_check
        _
      $region10: #{tpu_custom_call.1} parent=5 // pred_check_branch
        %555 = sbr.rel (%p552) target = $region12
      $region11: #{tpu_custom_call.1} parent=5 // pred_region
        %s556 = ssub.s32 %s36, 1
      $region12: #{tpu_custom_call.1} parent=5 // pred_fallthru
        _
      %p557 = scmp.lt.s32.totalorder %s36, 4
      // Predicated region
      $region13: #{tpu_custom_call.1} parent=5 // pred_check
        %p558 = pneg %p557
      $region14: #{tpu_custom_call.1} parent=5 // pred_check_branch
        %560 = sbr.rel (%p558) target = $region16
      $region15: #{tpu_custom_call.1} parent=5 // pred_region
        // Predicated region
        $region17: #{tpu_custom_call.1} parent=15 // pred_check
          %p561 = pneg %p68
        $region18: #{tpu_custom_call.1} parent=15 // pred_check_branch
          %563 = sbr.rel (%p561) target = $region20
        $region19: #{tpu_custom_call.1} parent=15 // pred_region
          %p564 = scmp.lt.s32.totalorder %s43, 1
          %s565 = scalar_select %p564, %s43, 1
          %s566 = smul.addr %s565, 2
          %s567 = smul.addr %s566, 8
          %s568 = scalar_lea.vmem %s0, %s567
        $region20: #{tpu_custom_call.1} parent=15 // pred_fallthru
          _
        // Predicated region
        $region21: #{tpu_custom_call.1} parent=15 // pred_check
          %p569 = pneg %p94
        $region22: #{tpu_custom_call.1} parent=15 // pred_check_branch
          %571 = sbr.rel (%p569) target = $region24
        $region23: #{tpu_custom_call.1} parent=15 // pred_region
          %p572 = scmp.lt.s32.totalorder %s43, 1
          %s573 = scalar_select %p572, %s43, 1
          %s574 = smul.addr %s573, 2
          %s575 = smul.addr %s574, 8
          %s576 = scalar_lea.vmem %s1, %s575
        $region24: #{tpu_custom_call.1} parent=15 // pred_fallthru
          _
        // Predicated region
        $region25: #{tpu_custom_call.1} parent=15 // pred_check
          %p577 = pneg %p120
        $region26: #{tpu_custom_call.1} parent=15 // pred_check_branch
          %579 = sbr.rel (%p577) target = $region28
        $region27: #{tpu_custom_call.1} parent=15 // pred_region
          %p580 = scmp.lt.s32.totalorder %s44, 1
          %s581 = scalar_select %p580, %s44, 1
          %s582 = smul.addr %s581, 4
          %s583 = smul.addr %s582, 4
          %s584 = scalar_lea.vmem %s2, %s583
        $region28: #{tpu_custom_call.1} parent=15 // pred_fallthru
          _
        // Predicated region
        $region29: #{tpu_custom_call.1} parent=15 // pred_check
          %p585 = pneg %p146
        $region30: #{tpu_custom_call.1} parent=15 // pred_check_branch
          %587 = sbr.rel (%p585) target = $region32
        $region31: #{tpu_custom_call.1} parent=15 // pred_region
          %p588 = scmp.lt.s32.totalorder %s44, 1
          %s589 = scalar_select %p588, %s44, 1
          %s590 = scalar_lea.vmem %s3, %s589
        $region32: #{tpu_custom_call.1} parent=15 // pred_fallthru
          _
        // Predicated region
        $region33: #{tpu_custom_call.1} parent=15 // pred_check
          %p591 = pneg %p172
        $region34: #{tpu_custom_call.1} parent=15 // pred_check_branch
          %593 = sbr.rel (%p591) target = $region36
        $region35: #{tpu_custom_call.1} parent=15 // pred_region
          %s594 = sand.u32 %s162, 1
          %s595 = scalar_lea.sflag [#allocation3], %s594
          %s596 = sand.u32 %s162, 1
          %s597 = smul.addr %s596, 16
          %s598 = scalar_lea.vmem [#allocation2], %s597
          %s600 = ssub.s32 256, 256
          %601 = vsyncadd %s595, %s600
          %s602 = smul.addr %s44, 4
          %s603 = smul.addr %s602, 64
          %s604 = scalar_lea.hbm %s4, %s603
          %s605 = sshll.u32 %s598, 4
          %s606 = int_to_ptr.vmem [resolvable:$true] %s605
          %611 = dma.hbm_to_vmem [thread:$0]  %s604, 256, %s606, %s595, 64, 64, 4
        $region36: #{tpu_custom_call.1} parent=15 // pred_fallthru
          _
        // Predicated region
        $region37: #{tpu_custom_call.1} parent=15 // pred_check
          %p612 = pneg %p198
        $region38: #{tpu_custom_call.1} parent=15 // pred_check_branch
          %614 = sbr.rel (%p612) target = $region40
        $region39: #{tpu_custom_call.1} parent=15 // pred_region
          %p615 = scmp.lt.s32.totalorder %s44, 1
          %s616 = scalar_select %p615, %s44, 1
          %s617 = scalar_lea.vmem %s5, %s616
        $region40: #{tpu_custom_call.1} parent=15 // pred_fallthru
          _
        // Predicated region
        $region41: #{tpu_custom_call.1} parent=15 // pred_check
          %p618 = pneg %p224
        $region42: #{tpu_custom_call.1} parent=15 // pred_check_branch
          %620 = sbr.rel (%p618) target = $region44
        $region43: #{tpu_custom_call.1} parent=15 // pred_region
          %s621 = sand.u32 %s36, 1
          %s622 = scalar_lea.sflag [#allocation6], %s621
          %s623 = sand.u32 %s214, 1
          %s624 = smul.addr %s623, 16
          %s625 = scalar_lea.vmem [#allocation5], %s624
          %s627 = ssub.s32 256, 256
          %628 = vsyncadd %s622, %s627
          %s629 = smul.addr %s44, 4
          %s630 = smul.addr %s629, 64
          %s631 = scalar_lea.hbm %s6, %s630
          %s632 = sshll.u32 %s625, 4
          %s633 = int_to_ptr.vmem [resolvable:$true] %s632
          %638 = dma.hbm_to_vmem [thread:$0]  %s631, 256, %s633, %s622, 64, 64, 4
        $region44: #{tpu_custom_call.1} parent=15 // pred_fallthru
          _
        // Predicated region
        $region45: #{tpu_custom_call.1} parent=15 // pred_check
          %p639 = pneg %p250
        $region46: #{tpu_custom_call.1} parent=15 // pred_check_branch
          %641 = sbr.rel (%p639) target = $region48
        $region47: #{tpu_custom_call.1} parent=15 // pred_region
          %p642 = scmp.lt.s32.totalorder %s44, 1
          %s643 = scalar_select %p642, %s44, 1
          %s644 = scalar_lea.vmem %s7, %s643
        $region48: #{tpu_custom_call.1} parent=15 // pred_fallthru
          _
        // Predicated region
        $region49: #{tpu_custom_call.1} parent=15 // pred_check
          %p645 = pneg %p276
        $region50: #{tpu_custom_call.1} parent=15 // pred_check_branch
          %647 = sbr.rel (%p645) target = $region52
        $region51: #{tpu_custom_call.1} parent=15 // pred_region
          %s648 = sand.u32 %s36, 1
          %s649 = scalar_lea.sflag [#allocation6], %s648
          %s650 = sand.u32 %s266, 1
          %s651 = smul.addr %s650, 16
          %s652 = scalar_lea.vmem [#allocation7], %s651
          %s654 = ssub.s32 256, 256
          %655 = vsyncadd %s649, %s654
          %s656 = smul.addr %s44, 4
          %s657 = smul.addr %s656, 64
          %s658 = scalar_lea.hbm %s8, %s657
          %s659 = sshll.u32 %s652, 4
          %s660 = int_to_ptr.vmem [resolvable:$true] %s659
          %665 = dma.hbm_to_vmem [thread:$0]  %s658, 256, %s660, %s649, 64, 64, 4
        $region52: #{tpu_custom_call.1} parent=15 // pred_fallthru
          _
        // Predicated region
        $region53: #{tpu_custom_call.1} parent=15 // pred_check
          %p666 = pneg %p302
        $region54: #{tpu_custom_call.1} parent=15 // pred_check_branch
          %668 = sbr.rel (%p666) target = $region56
        $region55: #{tpu_custom_call.1} parent=15 // pred_region
          %p669 = scmp.lt.s32.totalorder %s44, 1
          %s670 = scalar_select %p669, %s44, 1
          %s671 = scalar_lea.vmem %s9, %s670
        $region56: #{tpu_custom_call.1} parent=15 // pred_fallthru
          _
        // Predicated region
        $region57: #{tpu_custom_call.1} parent=15 // pred_check
          %p672 = pneg %p328
        $region58: #{tpu_custom_call.1} parent=15 // pred_check_branch
          %674 = sbr.rel (%p672) target = $region60
        $region59: #{tpu_custom_call.1} parent=15 // pred_region
          %p675 = scmp.lt.s32.totalorder %s44, 1
          %s676 = scalar_select %p675, %s44, 1
          %s677 = scalar_lea.vmem %s10, %s676
        $region60: #{tpu_custom_call.1} parent=15 // pred_fallthru
          _
        // Predicated region
        $region61: #{tpu_custom_call.1} parent=15 // pred_check
          %p678 = pneg %p354
        $region62: #{tpu_custom_call.1} parent=15 // pred_check_branch
          %680 = sbr.rel (%p678) target = $region64
        $region63: #{tpu_custom_call.1} parent=15 // pred_region
          %p681 = scmp.lt.s32.totalorder %s44, 1
          %s682 = scalar_select %p681, %s44, 1
          %s683 = scalar_lea.vmem %s11, %s682
        $region64: #{tpu_custom_call.1} parent=15 // pred_fallthru
          _
        // Predicated region
        $region65: #{tpu_custom_call.1} parent=15 // pred_check
          %p684 = pneg %p380
        $region66: #{tpu_custom_call.1} parent=15 // pred_check_branch
          %686 = sbr.rel (%p684) target = $region68
        $region67: #{tpu_custom_call.1} parent=15 // pred_region
          %s687 = sand.u32 %s370, 1
          %s688 = scalar_lea.sflag [#allocation9], %s687
          %s689 = sand.u32 %s370, 1
          %s690 = smul.addr %s689, 16
          %s691 = scalar_lea.vmem [#allocation8], %s690
          %s693 = ssub.s32 256, 256
          %694 = vsyncadd %s688, %s693
          %s695 = smul.addr %s44, 4
          %s696 = smul.addr %s695, 64
          %s697 = scalar_lea.hbm %s12, %s696
          %s698 = sshll.u32 %s691, 4
          %s699 = int_to_ptr.vmem [resolvable:$true] %s698
          %704 = dma.hbm_to_vmem [thread:$0]  %s697, 256, %s699, %s688, 64, 64, 4
        $region68: #{tpu_custom_call.1} parent=15 // pred_fallthru
          _
        // Predicated region
        $region69: #{tpu_custom_call.1} parent=15 // pred_check
          %p705 = pneg %p406
        $region70: #{tpu_custom_call.1} parent=15 // pred_check_branch
          %707 = sbr.rel (%p705) target = $region72
        $region71: #{tpu_custom_call.1} parent=15 // pred_region
          %p708 = scmp.lt.s32.totalorder %s44, 1
          %s709 = scalar_select %p708, %s44, 1
          %s710 = scalar_lea.vmem %s13, %s709
        $region72: #{tpu_custom_call.1} parent=15 // pred_fallthru
          _
        // Predicated region
        $region73: #{tpu_custom_call.1} parent=15 // pred_check
          %p711 = pneg %p432
        $region74: #{tpu_custom_call.1} parent=15 // pred_check_branch
          %713 = sbr.rel (%p711) target = $region76
        $region75: #{tpu_custom_call.1} parent=15 // pred_region
          %p714 = scmp.lt.s32.totalorder %s44, 1
          %s715 = scalar_select %p714, %s44, 1
          %s716 = smul.addr %s715, 8
          %s717 = smul.addr %s716, 4
          %s718 = scalar_lea.vmem %s14, %s717
        $region76: #{tpu_custom_call.1} parent=15 // pred_fallthru
          _
        // Predicated region
        $region77: #{tpu_custom_call.1} parent=15 // pred_check
          %p719 = pneg %p458
        $region78: #{tpu_custom_call.1} parent=15 // pred_check_branch
          %721 = sbr.rel (%p719) target = $region80
        $region79: #{tpu_custom_call.1} parent=15 // pred_region
          %p722 = scmp.lt.s32.totalorder %s44, 1
          %s723 = scalar_select %p722, %s44, 1
          %s724 = scalar_lea.vmem %s15, %s723
        $region80: #{tpu_custom_call.1} parent=15 // pred_fallthru
          _
        // Predicated region
        $region81: #{tpu_custom_call.1} parent=15 // pred_check
          %p725 = pneg %p484
        $region82: #{tpu_custom_call.1} parent=15 // pred_check_branch
          %727 = sbr.rel (%p725) target = $region84
        $region83: #{tpu_custom_call.1} parent=15 // pred_region
          %p728 = scmp.lt.s32.totalorder %s44, 1
          %s729 = scalar_select %p728, %s44, 1
          %s730 = scalar_lea.vmem %s16, %s729
        $region84: #{tpu_custom_call.1} parent=15 // pred_fallthru
          _
        // Predicated region
        $region85: #{tpu_custom_call.1} parent=15 // pred_check
          %p731 = pneg %p510
        $region86: #{tpu_custom_call.1} parent=15 // pred_check_branch
          %733 = sbr.rel (%p731) target = $region88
        $region87: #{tpu_custom_call.1} parent=15 // pred_region
          %p734 = scmp.lt.s32.totalorder %s44, 1
          %s735 = scalar_select %p734, %s44, 1
          %s736 = scalar_lea.vmem %s17, %s735
        $region88: #{tpu_custom_call.1} parent=15 // pred_fallthru
          _
      $region16: #{tpu_custom_call.1} parent=5 // pred_fallthru
        _
      %p737 = scmp.le.s32.totalorder 1, %s36
      %p738 = scmp.lt.s32.totalorder %s36, 5
      %p739 = pnand %p737, %p738
      %p740 = pneg %p739
      // Predicated region
      $region89: #{tpu_custom_call.1} parent=5 // pred_check
        _
      $region90: #{tpu_custom_call.1} parent=5 // pred_check_branch
        %742 = sbr.rel (%p739) target = $region92
      $region91: #{tpu_custom_call.1} parent=5 // pred_region
        %s743 = ssub.s32 %s36, 1
        %s744 = sand.u32 %s165, 1
        %s745 = scalar_lea.sflag [#allocation3], %s744
        %s746 = sand.u32 %s165, 1
        %s747 = smul.addr %s746, 16
        %s748 = scalar_lea.vmem [#allocation2], %s747
        // Predicated region
        $region93: #{tpu_custom_call.1} parent=91 // pred_check
          %p749 = pneg %p178
        $region94: #{tpu_custom_call.1} parent=91 // pred_check_branch
          %751 = sbr.rel (%p749) target = $region96
        $region95: #{tpu_custom_call.1} parent=91 // pred_region
          %752 = dma.done %s745, 256
        $region96: #{tpu_custom_call.1} parent=91 // pred_fallthru
          _
        %s753 = sand.u32 %s41, 1
        %s754 = scalar_lea.sflag [#allocation6], %s753
        %s755 = sand.u32 %s217, 1
        %s756 = smul.addr %s755, 16
        %s757 = scalar_lea.vmem [#allocation5], %s756
        // Predicated region
        $region97: #{tpu_custom_call.1} parent=91 // pred_check
          %p758 = pneg %p230
        $region98: #{tpu_custom_call.1} parent=91 // pred_check_branch
          %760 = sbr.rel (%p758) target = $region100
        $region99: #{tpu_custom_call.1} parent=91 // pred_region
          %761 = dma.done %s754, 256
        $region100: #{tpu_custom_call.1} parent=91 // pred_fallthru
          _
        %s762 = sand.u32 %s41, 1
        %s763 = scalar_lea.sflag [#allocation6], %s762
        %s764 = sand.u32 %s269, 1
        %s765 = smul.addr %s764, 16
        %s766 = scalar_lea.vmem [#allocation7], %s765
        // Predicated region
        $region101: #{tpu_custom_call.1} parent=91 // pred_check
          %p767 = pneg %p282
        $region102: #{tpu_custom_call.1} parent=91 // pred_check_branch
          %769 = sbr.rel (%p767) target = $region104
        $region103: #{tpu_custom_call.1} parent=91 // pred_region
          %770 = dma.done %s763, 256
        $region104: #{tpu_custom_call.1} parent=91 // pred_fallthru
          _
        %s771 = sand.u32 %s373, 1
        %s772 = scalar_lea.sflag [#allocation9], %s771
        %s773 = sand.u32 %s373, 1
        %s774 = smul.addr %s773, 16
        %s775 = scalar_lea.vmem [#allocation8], %s774
        // Predicated region
        $region105: #{tpu_custom_call.1} parent=91 // pred_check
          %p776 = pneg %p386
        $region106: #{tpu_custom_call.1} parent=91 // pred_check_branch
          %778 = sbr.rel (%p776) target = $region108
        $region107: #{tpu_custom_call.1} parent=91 // pred_region
          %779 = dma.done %s772, 256
        $region108: #{tpu_custom_call.1} parent=91 // pred_fallthru
          _
        %p780 = scmp.lt.s32.totalorder %s45, 1
        %s781 = scalar_select %p780, %s45, 1
        %s782 = smul.addr %s781, 2
        %s783 = smul.addr %s782, 8
        %s784 = scalar_lea.vmem %s0, %s783
        %p785 = pneg %p74
        %p786 = pneg %p71
        %p787 = scmp.lt.s32.totalorder %s45, 1
        %s788 = scalar_select %p787, %s45, 1
        %s789 = smul.addr %s788, 2
        %s790 = smul.addr %s789, 8
        %s791 = scalar_lea.vmem %s1, %s790
        %p792 = pneg %p100
        %p793 = pneg %p97
        %p794 = scmp.lt.s32.totalorder %s46, 1
        %s795 = scalar_select %p794, %s46, 1
        %s796 = smul.addr %s795, 4
        %s797 = smul.addr %s796, 4
        %s798 = scalar_lea.vmem %s2, %s797
        %p799 = pneg %p126
        %p800 = pneg %p123
        %p801 = scmp.lt.s32.totalorder %s46, 1
        %s802 = scalar_select %p801, %s46, 1
        %s803 = scalar_lea.vmem %s3, %s802
        %p804 = pneg %p152
        %p805 = pneg %p149
        %s806 = sand.u32 %s165, 1
        %s807 = scalar_lea.sflag [#allocation3], %s806
        %s808 = sand.u32 %s165, 1
        %s809 = smul.addr %s808, 16
        %s810 = scalar_lea.vmem [#allocation2], %s809
        %p811 = pneg %p178
        %p812 = pneg %p175
        %p813 = scmp.lt.s32.totalorder %s46, 1
        %s814 = scalar_select %p813, %s46, 1
        %s815 = scalar_lea.vmem %s5, %s814
        %p816 = pneg %p204
        %p817 = pneg %p201
        %s818 = sand.u32 %s41, 1
        %s819 = scalar_lea.sflag [#allocation6], %s818
        %s820 = sand.u32 %s217, 1
        %s821 = smul.addr %s820, 16
        %s822 = scalar_lea.vmem [#allocation5], %s821
        %p823 = pneg %p230
        %p824 = pneg %p227
        %p825 = scmp.lt.s32.totalorder %s46, 1
        %s826 = scalar_select %p825, %s46, 1
        %s827 = scalar_lea.vmem %s7, %s826
        %p828 = pneg %p256
        %p829 = pneg %p253
        %s830 = sand.u32 %s41, 1
        %s831 = scalar_lea.sflag [#allocation6], %s830
        %s832 = sand.u32 %s269, 1
        %s833 = smul.addr %s832, 16
        %s834 = scalar_lea.vmem [#allocation7], %s833
        %p835 = pneg %p282
        %p836 = pneg %p279
        %p837 = scmp.lt.s32.totalorder %s46, 1
        %s838 = scalar_select %p837, %s46, 1
        %s839 = scalar_lea.vmem %s9, %s838
        %p840 = pneg %p308
        %p841 = pneg %p305
        %p842 = scmp.lt.s32.totalorder %s46, 1
        %s843 = scalar_select %p842, %s46, 1
        %s844 = scalar_lea.vmem %s10, %s843
        %p845 = pneg %p334
        %p846 = pneg %p331
        %p847 = scmp.lt.s32.totalorder %s46, 1
        %s848 = scalar_select %p847, %s46, 1
        %s849 = scalar_lea.vmem %s11, %s848
        %p850 = pneg %p360
        %p851 = pneg %p357
        %s852 = sand.u32 %s373, 1
        %s853 = scalar_lea.sflag [#allocation9], %s852
        %s854 = sand.u32 %s373, 1
        %s855 = smul.addr %s854, 16
        %s856 = scalar_lea.vmem [#allocation8], %s855
        %p857 = pneg %p386
        %p858 = pneg %p383
        %p859 = scmp.lt.s32.totalorder %s46, 1
        %s860 = scalar_select %p859, %s46, 1
        %s861 = scalar_lea.vmem %s13, %s860
        %p862 = pneg %p412
        %p863 = pneg %p409
        %p864 = scmp.lt.s32.totalorder %s46, 1
        %s865 = scalar_select %p864, %s46, 1
        %s866 = smul.addr %s865, 8
        %s867 = smul.addr %s866, 4
        %s868 = scalar_lea.vmem %s14, %s867
        %p869 = pneg %p438
        %p870 = pneg %p435
        %p871 = scmp.lt.s32.totalorder %s46, 1
        %s872 = scalar_select %p871, %s46, 1
        %s873 = scalar_lea.vmem %s15, %s872
        %p874 = pneg %p464
        %p875 = pneg %p461
        %p876 = scmp.lt.s32.totalorder %s46, 1
        %s877 = scalar_select %p876, %s46, 1
        %s878 = scalar_lea.vmem %s16, %s877
        %p879 = pneg %p490
        %p880 = pneg %p487
        %p881 = scmp.lt.s32.totalorder %s46, 1
        %s882 = scalar_select %p881, %s46, 1
        %s883 = scalar_lea.vmem %s17, %s882
        %p884 = pneg %p516
        %p885 = pneg %p513
        %p886 = pneg %p542
        %p887 = pneg %p539
        %s888 = sand.u32 %s529, 1
        %s889 = scalar_lea.sflag [#allocation4], %s888
        %s890 = sand.u32 %s529, 1
        %s891 = smul.addr %s890, 16
        %s892 = scalar_lea.vmem [#allocation10], %s891
        %p893 = scmp.lt.s32.totalorder %s45, 1
        %s894 = scalar_select %p893, %s45, 1
        %s895 = smul.addr %s894, 2
        %s896 = smul.addr %s895, 8
        %s897 = scalar_lea.vmem %s0, %s896
        %p898 = scmp.lt.s32.totalorder %s45, 1
        %s899 = scalar_select %p898, %s45, 1
        %s900 = smul.addr %s899, 2
        %s901 = smul.addr %s900, 8
        %s902 = scalar_lea.vmem %s1, %s901
        %p903 = scmp.lt.s32.totalorder %s46, 1
        %s904 = scalar_select %p903, %s46, 1
        %s905 = smul.addr %s904, 4
        %s906 = smul.addr %s905, 4
        %s907 = scalar_lea.vmem %s2, %s906
        %p908 = scmp.lt.s32.totalorder %s46, 1
        %s909 = scalar_select %p908, %s46, 1
        %s910 = scalar_lea.vmem %s3, %s909
        %p911 = scmp.lt.s32.totalorder %s46, 1
        %s912 = scalar_select %p911, %s46, 1
        %s913 = scalar_lea.vmem %s5, %s912
        %p914 = scmp.lt.s32.totalorder %s46, 1
        %s915 = scalar_select %p914, %s46, 1
        %s916 = scalar_lea.vmem %s7, %s915
        %p917 = scmp.lt.s32.totalorder %s46, 1
        %s918 = scalar_select %p917, %s46, 1
        %s919 = scalar_lea.vmem %s9, %s918
        %p920 = scmp.lt.s32.totalorder %s46, 1
        %s921 = scalar_select %p920, %s46, 1
        %s922 = scalar_lea.vmem %s10, %s921
        %p923 = scmp.lt.s32.totalorder %s46, 1
        %s924 = scalar_select %p923, %s46, 1
        %s925 = scalar_lea.vmem %s11, %s924
        %p926 = scmp.lt.s32.totalorder %s46, 1
        %s927 = scalar_select %p926, %s46, 1
        %s928 = scalar_lea.vmem %s13, %s927
        %p929 = scmp.lt.s32.totalorder %s46, 1
        %s930 = scalar_select %p929, %s46, 1
        %s931 = smul.addr %s930, 8
        %s932 = smul.addr %s931, 4
        %s933 = scalar_lea.vmem %s14, %s932
        %p934 = scmp.lt.s32.totalorder %s46, 1
        %s935 = scalar_select %p934, %s46, 1
        %s936 = scalar_lea.vmem %s15, %s935
        %p937 = scmp.lt.s32.totalorder %s46, 1
        %s938 = scalar_select %p937, %s46, 1
        %s939 = scalar_lea.vmem %s16, %s938
        %p940 = scmp.lt.s32.totalorder %s46, 1
        %s941 = scalar_select %p940, %s46, 1
        %s942 = scalar_lea.vmem %s17, %s941
        %p944 = scmp.eq.s32.totalorder %s46, 0
        // Predicated region
        $region109: #{tpu_custom_call.1} parent=91 // pred_check
          %p945 = pneg %p944
        $region110: #{tpu_custom_call.1} parent=91 // pred_check_branch
          %947 = sbr.rel (%p945) target = $region112
        $region111: #{tpu_custom_call.1} parent=91 // pred_region
          %v948 = vld [vmem:[%s897] sm:$0xff]
          %v949 = vld [vmem:[%s897 + $0x8] sm:$0xff]
          %vm950 = vcmask 261120
          %951 = vst.msk [vmem:[%s892] sm:$0xff] %vm950, %v948
          %952 = vst.msk [vmem:[%s892 + $0x8] sm:$0xff] %vm950, %v949
        $region112: #{tpu_custom_call.1} parent=91 // pred_fallthru
          _
        %v953 = vld [vmem:[%s892] sm:$0xff]
        %v954 = vld [vmem:[%s892 + $0x8] sm:$0xff]
        %v955 = vld [vmem:[%s902] sm:$0xff]
        %v956 = vld [vmem:[%s902 + $0x8] sm:$0xff]
        %v957 = vadd.f32 %v953, %v955
        %v958 = vadd.f32 %v954, %v956
        %v959 = vpack.c.bf16 %v958, %v957
        %v960 = vpack.c.bf16 %v954, %v953
        %v961 = vld [vmem:[%s907] sm:$0xf]
        %v962 = vld [vmem:[%s907 + $0x4] sm:$0xf]
        %v963 = vld [vmem:[%s907 + $0x8] sm:$0xf]
        %v964 = vld [vmem:[%s907 + $0xc] sm:$0xf]
        %v965 = vld [vmem:[%s910] sm:$0x1]
        %v967 = vlaneseq
        %v968 = vshrl.u32 %v967, 7
        %v969 = vsub.s32 0, %v968
        %v970 = vrot.slane %v965, %v969
        %v976 = vunpack.c.l.b16 %v961
        %v977 = vunpack.c.l.b16 %v962
        %v978 = vunpack.c.l.b16 %v963
        %v979 = vunpack.c.l.b16 %v964
        %v980 = vpack.c.b16 %v977, %v976
        %v981 = vpack.c.b16 %v979, %v978
        %vm984 = vcmask 261120
        %v986 = vsel %vm984, %v959, 0
        %988 = vmatprep.subr.bf16.mxu0 0
        %989 = vmatpush1.bf16.msra.mxu0 %v980
        %990 = vmatprep.subr.bf16.mxu0 0
        %991 = vmatpush1.bf16.msra.mxu0 %v981
        %992 = vmatprep.subr.bf16.mxu0 0
        %993 = vmatpush1.bf16.msra.mxu0 0
        %994 = vmatprep.subr.bf16.mxu0 0
        %995 = vmatpush1.bf16.msra.mxu0 0
        %996 = vmatprep.subr.bf16.mxu0 0
        %997 = vmatpush1.bf16.msra.mxu0 0
        %998 = vmatprep.subr.bf16.mxu0 0
        %999 = vmatpush1.bf16.msra.mxu0 0
        %1000 = vmatprep.subr.bf16.mxu0 0
        %1001 = vmatpush1.bf16.msra.mxu0 0
        %1002 = vmatprep.subr.bf16.mxu0 0
        %1003 = vmatpush1.bf16.msra.mxu0 0
        %1004 = vmatprep.subr.bf16.mxu0 0
        %1005 = vmatpush1.bf16.msra.mxu0 0
        %1006 = vmatprep.subr.bf16.mxu0 0
        %1007 = vmatpush1.bf16.msra.mxu0 0
        %1008 = vmatprep.subr.bf16.mxu0 0
        %1009 = vmatpush1.bf16.msra.mxu0 0
        %1010 = vmatprep.subr.bf16.mxu0 0
        %1011 = vmatpush1.bf16.msra.mxu0 0
        %1012 = vmatprep.subr.bf16.mxu0 0
        %1013 = vmatpush1.bf16.msra.mxu0 0
        %1014 = vmatprep.subr.bf16.mxu0 0
        %1015 = vmatpush1.bf16.msra.mxu0 0
        %1016 = vmatprep.subr.bf16.mxu0 0
        %1017 = vmatpush1.bf16.msra.mxu0 0
        %1018 = vmatprep.subr.bf16.mxu0 0
        %1019 = vmatpush1.bf16.msra.mxu0 0
        %1020 = vmatprep.mubr.bf16.mxu0 0
        %1021 = vmatmul.mubr.bf16.gmra.mrb[0].mxu0 %v986
        %v1022 = vpop.f32.mrb[0].mxu0
        %v1023 = vadd.f32 %v970, %v1022
        %v1024 = vpop.f32.mrb[0].mxu0
        %v1025 = vpop.f32.mrb[0].mxu0
        %v1026 = vadd.f32 %v970, %v1025
        %v1027 = vpop.f32.mrb[0].mxu0
        %1028 = vdwg.mxu0
        %v1029 = vld [vmem:[%s748] sm:$0xf]
        %v1030 = vld [vmem:[%s748 + $0x4] sm:$0xf]
        %v1031 = vld [vmem:[%s748 + $0x8] sm:$0xf]
        %v1032 = vld [vmem:[%s748 + $0xc] sm:$0xf]
        %v1033 = vld [vmem:[%s913] sm:$0x1]
        %v1035 = vlaneseq
        %v1036 = vshrl.u32 %v1035, 7
        %v1037 = vsub.s32 0, %v1036
        %v1038 = vrot.slane %v1033, %v1037
        %v1044 = vunpack.c.l.b16 %v1029
        %v1045 = vunpack.c.l.b16 %v1030
        %v1046 = vunpack.c.l.b16 %v1031
        %v1047 = vunpack.c.l.b16 %v1032
        %v1048 = vpack.c.b16 %v1045, %v1044
        %v1049 = vpack.c.b16 %v1047, %v1046
        %1052 = vmatprep.subr.bf16.mxu0 0
        %1053 = vmatpush1.bf16.msra.mxu0 %v1048
        %1054 = vmatprep.subr.bf16.mxu0 0
        %1055 = vmatpush1.bf16.msra.mxu0 %v1049
        %1056 = vmatprep.subr.bf16.mxu0 0
        %1057 = vmatpush1.bf16.msra.mxu0 0
        %1058 = vmatprep.subr.bf16.mxu0 0
        %1059 = vmatpush1.bf16.msra.mxu0 0
        %1060 = vmatprep.subr.bf16.mxu0 0
        %1061 = vmatpush1.bf16.msra.mxu0 0
        %1062 = vmatprep.subr.bf16.mxu0 0
        %1063 = vmatpush1.bf16.msra.mxu0 0
        %1064 = vmatprep.subr.bf16.mxu0 0
        %1065 = vmatpush1.bf16.msra.mxu0 0
        %1066 = vmatprep.subr.bf16.mxu0 0
        %1067 = vmatpush1.bf16.msra.mxu0 0
        %1068 = vmatprep.subr.bf16.mxu0 0
        %1069 = vmatpush1.bf16.msra.mxu0 0
        %1070 = vmatprep.subr.bf16.mxu0 0
        %1071 = vmatpush1.bf16.msra.mxu0 0
        %1072 = vmatprep.subr.bf16.mxu0 0
        %1073 = vmatpush1.bf16.msra.mxu0 0
        %1074 = vmatprep.subr.bf16.mxu0 0
        %1075 = vmatpush1.bf16.msra.mxu0 0
        %1076 = vmatprep.subr.bf16.mxu0 0
        %1077 = vmatpush1.bf16.msra.mxu0 0
        %1078 = vmatprep.subr.bf16.mxu0 0
        %1079 = vmatpush1.bf16.msra.mxu0 0
        %1080 = vmatprep.subr.bf16.mxu0 0
        %1081 = vmatpush1.bf16.msra.mxu0 0
        %1082 = vmatprep.subr.bf16.mxu0 0
        %1083 = vmatpush1.bf16.msra.mxu0 0
        %1084 = vmatprep.mubr.bf16.mxu0 0
        %1085 = vmatmul.mubr.bf16.gmra.mrb[0].mxu0 %v986
        %v1086 = vpop.f32.mrb[0].mxu0
        %v1087 = vadd.f32 %v1038, %v1086
        %v1088 = vpop.f32.mrb[0].mxu0
        %v1089 = vpop.f32.mrb[0].mxu0
        %v1090 = vadd.f32 %v1038, %v1089
        %v1091 = vpop.f32.mrb[0].mxu0
        %1092 = vdwg.mxu0
        %v1093 = vld [vmem:[%s757] sm:$0xf]
        %v1094 = vld [vmem:[%s757 + $0x4] sm:$0xf]
        %v1095 = vld [vmem:[%s757 + $0x8] sm:$0xf]
        %v1096 = vld [vmem:[%s757 + $0xc] sm:$0xf]
        %v1097 = vld [vmem:[%s916] sm:$0x1]
        %v1099 = vlaneseq
        %v1100 = vshrl.u32 %v1099, 7
        %v1101 = vsub.s32 0, %v1100
        %v1102 = vrot.slane %v1097, %v1101
        %v1108 = vunpack.c.l.b16 %v1093
        %v1109 = vunpack.c.l.b16 %v1094
        %v1110 = vunpack.c.l.b16 %v1095
        %v1111 = vunpack.c.l.b16 %v1096
        %v1112 = vpack.c.b16 %v1109, %v1108
        %v1113 = vpack.c.b16 %v1111, %v1110
        %v1117 = vsel %vm984, %v960, 0
        %1119 = vmatprep.subr.bf16.mxu0 0
        %1120 = vmatpush1.bf16.msra.mxu0 %v1112
        %1121 = vmatprep.subr.bf16.mxu0 0
        %1122 = vmatpush1.bf16.msra.mxu0 %v1113
        %1123 = vmatprep.subr.bf16.mxu0 0
        %1124 = vmatpush1.bf16.msra.mxu0 0
        %1125 = vmatprep.subr.bf16.mxu0 0
        %1126 = vmatpush1.bf16.msra.mxu0 0
        %1127 = vmatprep.subr.bf16.mxu0 0
        %1128 = vmatpush1.bf16.msra.mxu0 0
        %1129 = vmatprep.subr.bf16.mxu0 0
        %1130 = vmatpush1.bf16.msra.mxu0 0
        %1131 = vmatprep.subr.bf16.mxu0 0
        %1132 = vmatpush1.bf16.msra.mxu0 0
        %1133 = vmatprep.subr.bf16.mxu0 0
        %1134 = vmatpush1.bf16.msra.mxu0 0
        %1135 = vmatprep.subr.bf16.mxu0 0
        %1136 = vmatpush1.bf16.msra.mxu0 0
        %1137 = vmatprep.subr.bf16.mxu0 0
        %1138 = vmatpush1.bf16.msra.mxu0 0
        %1139 = vmatprep.subr.bf16.mxu0 0
        %1140 = vmatpush1.bf16.msra.mxu0 0
        %1141 = vmatprep.subr.bf16.mxu0 0
        %1142 = vmatpush1.bf16.msra.mxu0 0
        %1143 = vmatprep.subr.bf16.mxu0 0
        %1144 = vmatpush1.bf16.msra.mxu0 0
        %1145 = vmatprep.subr.bf16.mxu0 0
        %1146 = vmatpush1.bf16.msra.mxu0 0
        %1147 = vmatprep.subr.bf16.mxu0 0
        %1148 = vmatpush1.bf16.msra.mxu0 0
        %1149 = vmatprep.subr.bf16.mxu0 0
        %1150 = vmatpush1.bf16.msra.mxu0 0
        %1151 = vmatprep.mubr.bf16.mxu0 0
        %1152 = vmatmul.mubr.bf16.gmra.mrb[0].mxu0 %v1117
        %v1153 = vpop.f32.mrb[0].mxu0
        %v1154 = vadd.f32 %v1102, %v1153
        %v1155 = vpop.f32.mrb[0].mxu0
        %v1156 = vpop.f32.mrb[0].mxu0
        %v1157 = vadd.f32 %v1102, %v1156
        %v1158 = vpop.f32.mrb[0].mxu0
        %1159 = vdwg.mxu0
        %v1160 = vpack.c.bf16 %v1026, %v1023
        %v1161 = vpack.c.bf16 %v1090, %v1087
        %v1162 = vpack.c.bf16 %v1157, %v1154
        %v1163 = vld [vmem:[%s766] sm:$0xf]
        %v1164 = vld [vmem:[%s766 + $0x4] sm:$0xf]
        %v1165 = vld [vmem:[%s766 + $0x8] sm:$0xf]
        %v1166 = vld [vmem:[%s766 + $0xc] sm:$0xf]
        %vm1167 = vcmask 64512
        %v1169 = vsel %vm1167, %v1160, 0
        %v1172 = vsel %vm1167, %v1161, 0
        %1174 = vmatprep.subr.bf16.mxu0 0
        %1175 = vmatpush1.bf16.xpose.msra.mxu0 %v1172
        %1176 = vmatprep.subr.bf16.mxu0 0
        %1177 = vmatpush1.bf16.xpose.msra.mxu0 0
        %1178 = vmatprep.subr.bf16.mxu0 0
        %1179 = vmatpush1.bf16.xpose.msra.mxu0 0
        %1180 = vmatprep.subr.bf16.mxu0 0
        %1181 = vmatpush1.bf16.xpose.msra.mxu0 0
        %1182 = vmatprep.subr.bf16.mxu0 0
        %1183 = vmatpush1.bf16.xpose.msra.mxu0 0
        %1184 = vmatprep.subr.bf16.mxu0 0
        %1185 = vmatpush1.bf16.xpose.msra.mxu0 0
        %1186 = vmatprep.subr.bf16.mxu0 0
        %1187 = vmatpush1.bf16.xpose.msra.mxu0 0
        %1188 = vmatprep.subr.bf16.mxu0 0
        %1189 = vmatpush1.bf16.xpose.msra.mxu0 0
        %1190 = vmatprep.subr.bf16.mxu0 0
        %1191 = vmatpush1.bf16.xpose.msra.mxu0 0
        %1192 = vmatprep.subr.bf16.mxu0 0
        %1193 = vmatpush1.bf16.xpose.msra.mxu0 0
        %1194 = vmatprep.subr.bf16.mxu0 0
        %1195 = vmatpush1.bf16.xpose.msra.mxu0 0
        %1196 = vmatprep.subr.bf16.mxu0 0
        %1197 = vmatpush1.bf16.xpose.msra.mxu0 0
        %1198 = vmatprep.subr.bf16.mxu0 0
        %1199 = vmatpush1.bf16.xpose.msra.mxu0 0
        %1200 = vmatprep.subr.bf16.mxu0 0
        %1201 = vmatpush1.bf16.xpose.msra.mxu0 0
        %1202 = vmatprep.subr.bf16.mxu0 0
        %1203 = vmatpush1.bf16.xpose.msra.mxu0 0
        %1204 = vmatprep.subr.bf16.mxu0 0
        %1205 = vmatpush1.bf16.xpose.msra.mxu0 0
        %1206 = vmatprep.mubr.bf16.mxu0 0
        %1207 = vmatmul.mubr.bf16.gmra.mrb[0].mxu0 %v1169
        %v1208 = vpop.f32.mrb[0].mxu0
        %v1209 = vadd.f32 0.0, %v1208
        %v1210 = vpop.f32.mrb[0].mxu0
        %v1211 = vpop.f32.mrb[0].mxu0
        %v1212 = vadd.f32 0.0, %v1211
        %v1213 = vpop.f32.mrb[0].mxu0
        %1214 = vdwg.mxu0
        %v1215 = vmul.f32 %v1209, 0.35355338
        %v1216 = vmul.f32 %v1212, 0.35355338
        %vm1217 = vcmask 130048
        %v1218 = vsel %vm1217, %v1215, -inf
        %1219 = vmax.xlane.f32.xlu0 %v1218
        %v1220 = vpop.xlane.xlu0 %1219
        %v1221 = vsel %vm1217, %v1216, -inf
        %1222 = vmax.xlane.f32.xlu0 %v1221
        %v1223 = vpop.xlane.xlu0 %1222
        %v1224 = vsub.f32 %v1215, %v1220
        %v1225 = vsub.f32 %v1216, %v1223
        %v1226 = vmul.f32 %v1224, 1.442695
        %v1227 = vpow.pop %v1226
        %v1228 = vmul.f32 %v1225, 1.442695
        %v1229 = vpow.pop %v1228
        %v1230 = vsel %vm1217, %v1227, 0.0
        %1231 = vadd.xlane.f32.xlu0 %v1230
        %v1232 = vpop.xlane.xlu0 %1231
        %v1233 = vsel %vm1217, %v1229, 0.0
        %1234 = vadd.xlane.f32.xlu0 %v1233
        %v1235 = vpop.xlane.xlu0 %1234
        %v1236 = vrcp.pop %v1232
        %v1237 = vrcp.pop %v1235
        %v1238 = vmul.f32 %v1227, %v1236
        %v1239 = vmul.f32 %v1229, %v1237
        %v1240 = vpack.c.bf16 %v1239, %v1238
        %v1242 = vsel %vm1217, %v1240, 0
        %1244 = vmatprep.subr.bf16.mxu0 0
        %1245 = vmatpush1.bf16.msra.mxu0 %v1162
        %1246 = vmatprep.subr.bf16.mxu0 0
        %1247 = vmatpush1.bf16.msra.mxu0 0
        %1248 = vmatprep.subr.bf16.mxu0 0
        %1249 = vmatpush1.bf16.msra.mxu0 0
        %1250 = vmatprep.subr.bf16.mxu0 0
        %1251 = vmatpush1.bf16.msra.mxu0 0
        %1252 = vmatprep.subr.bf16.mxu0 0
        %1253 = vmatpush1.bf16.msra.mxu0 0
        %1254 = vmatprep.subr.bf16.mxu0 0
        %1255 = vmatpush1.bf16.msra.mxu0 0
        %1256 = vmatprep.subr.bf16.mxu0 0
        %1257 = vmatpush1.bf16.msra.mxu0 0
        %1258 = vmatprep.subr.bf16.mxu0 0
        %1259 = vmatpush1.bf16.msra.mxu0 0
        %1260 = vmatprep.subr.bf16.mxu0 0
        %1261 = vmatpush1.bf16.msra.mxu0 0
        %1262 = vmatprep.subr.bf16.mxu0 0
        %1263 = vmatpush1.bf16.msra.mxu0 0
        %1264 = vmatprep.subr.bf16.mxu0 0
        %1265 = vmatpush1.bf16.msra.mxu0 0
        %1266 = vmatprep.subr.bf16.mxu0 0
        %1267 = vmatpush1.bf16.msra.mxu0 0
        %1268 = vmatprep.subr.bf16.mxu0 0
        %1269 = vmatpush1.bf16.msra.mxu0 0
        %1270 = vmatprep.subr.bf16.mxu0 0
        %1271 = vmatpush1.bf16.msra.mxu0 0
        %1272 = vmatprep.subr.bf16.mxu0 0
        %1273 = vmatpush1.bf16.msra.mxu0 0
        %1274 = vmatprep.subr.bf16.mxu0 0
        %1275 = vmatpush1.bf16.msra.mxu0 0
        %1276 = vmatprep.mubr.bf16.mxu0 0
        %1277 = vmatmul.mubr.bf16.gmra.mrb[0].mxu0 %v1242
        %v1278 = vpop.f32.mrb[0].mxu0
        %v1279 = vadd.f32 0.0, %v1278
        %v1280 = vpop.f32.mrb[0].mxu0
        %v1281 = vpop.f32.mrb[0].mxu0
        %v1282 = vadd.f32 0.0, %v1281
        %v1283 = vpop.f32.mrb[0].mxu0
        %1284 = vdwg.mxu0
        %v1285 = vpack.c.bf16 %v1282, %v1279
        %1287 = vrot.lane.b32.xlu0 %v1160, 120
        %v1288 = vpop.permute.xlu0 %1287
        %1290 = vrot.lane.b32.xlu0 %v1161, 120
        %v1291 = vpop.permute.xlu0 %1290
        %v1293 = vsel %vm1167, %v1288, 0
        %v1296 = vsel %vm1167, %v1291, 0
        %1298 = vmatprep.subr.bf16.mxu0 0
        %1299 = vmatpush1.bf16.xpose.msra.mxu0 %v1296
        %1300 = vmatprep.subr.bf16.mxu0 0
        %1301 = vmatpush1.bf16.xpose.msra.mxu0 0
        %1302 = vmatprep.subr.bf16.mxu0 0
        %1303 = vmatpush1.bf16.xpose.msra.mxu0 0
        %1304 = vmatprep.subr.bf16.mxu0 0
        %1305 = vmatpush1.bf16.xpose.msra.mxu0 0
        %1306 = vmatprep.subr.bf16.mxu0 0
        %1307 = vmatpush1.bf16.xpose.msra.mxu0 0
        %1308 = vmatprep.subr.bf16.mxu0 0
        %1309 = vmatpush1.bf16.xpose.msra.mxu0 0
        %1310 = vmatprep.subr.bf16.mxu0 0
        %1311 = vmatpush1.bf16.xpose.msra.mxu0 0
        %1312 = vmatprep.subr.bf16.mxu0 0
        %1313 = vmatpush1.bf16.xpose.msra.mxu0 0
        %1314 = vmatprep.subr.bf16.mxu0 0
        %1315 = vmatpush1.bf16.xpose.msra.mxu0 0
        %1316 = vmatprep.subr.bf16.mxu0 0
        %1317 = vmatpush1.bf16.xpose.msra.mxu0 0
        %1318 = vmatprep.subr.bf16.mxu0 0
        %1319 = vmatpush1.bf16.xpose.msra.mxu0 0
        %1320 = vmatprep.subr.bf16.mxu0 0
        %1321 = vmatpush1.bf16.xpose.msra.mxu0 0
        %1322 = vmatprep.subr.bf16.mxu0 0
        %1323 = vmatpush1.bf16.xpose.msra.mxu0 0
        %1324 = vmatprep.subr.bf16.mxu0 0
        %1325 = vmatpush1.bf16.xpose.msra.mxu0 0
        %1326 = vmatprep.subr.bf16.mxu0 0
        %1327 = vmatpush1.bf16.xpose.msra.mxu0 0
        %1328 = vmatprep.subr.bf16.mxu0 0
        %1329 = vmatpush1.bf16.xpose.msra.mxu0 0
        %1330 = vmatprep.mubr.bf16.mxu0 0
        %1331 = vmatmul.mubr.bf16.gmra.mrb[0].mxu0 %v1293
        %v1332 = vpop.f32.mrb[0].mxu0
        %v1333 = vadd.f32 0.0, %v1332
        %v1334 = vpop.f32.mrb[0].mxu0
        %v1335 = vpop.f32.mrb[0].mxu0
        %v1336 = vadd.f32 0.0, %v1335
        %v1337 = vpop.f32.mrb[0].mxu0
        %1338 = vdwg.mxu0
        %v1339 = vmul.f32 %v1333, 0.35355338
        %v1340 = vmul.f32 %v1336, 0.35355338
        %v1341 = vsel %vm1217, %v1339, -inf
        %1342 = vmax.xlane.f32.xlu0 %v1341
        %v1343 = vpop.xlane.xlu0 %1342
        %v1344 = vsel %vm1217, %v1340, -inf
        %1345 = vmax.xlane.f32.xlu0 %v1344
        %v1346 = vpop.xlane.xlu0 %1345
        %v1347 = vsub.f32 %v1339, %v1343
        %v1348 = vsub.f32 %v1340, %v1346
        %v1349 = vmul.f32 %v1347, 1.442695
        %v1350 = vpow.pop %v1349
        %v1351 = vmul.f32 %v1348, 1.442695
        %v1352 = vpow.pop %v1351
        %v1353 = vsel %vm1217, %v1350, 0.0
        %1354 = vadd.xlane.f32.xlu0 %v1353
        %v1355 = vpop.xlane.xlu0 %1354
        %v1356 = vsel %vm1217, %v1352, 0.0
        %1357 = vadd.xlane.f32.xlu0 %v1356
        %v1358 = vpop.xlane.xlu0 %1357
        %v1359 = vrcp.pop %v1355
        %v1360 = vrcp.pop %v1358
        %v1361 = vmul.f32 %v1350, %v1359
        %v1362 = vmul.f32 %v1352, %v1360
        %v1363 = vpack.c.bf16 %v1362, %v1361
        %1365 = vrot.lane.b32.xlu0 %v1162, 120
        %v1366 = vpop.permute.xlu0 %1365
        %v1369 = vsel %vm1217, %v1363, 0
        %1371 = vmatprep.subr.bf16.mxu0 0
        %1372 = vmatpush1.bf16.msra.mxu0 %v1366
        %1373 = vmatprep.subr.bf16.mxu0 0
        %1374 = vmatpush1.bf16.msra.mxu0 0
        %1375 = vmatprep.subr.bf16.mxu0 0
        %1376 = vmatpush1.bf16.msra.mxu0 0
        %1377 = vmatprep.subr.bf16.mxu0 0
        %1378 = vmatpush1.bf16.msra.mxu0 0
        %1379 = vmatprep.subr.bf16.mxu0 0
        %1380 = vmatpush1.bf16.msra.mxu0 0
        %1381 = vmatprep.subr.bf16.mxu0 0
        %1382 = vmatpush1.bf16.msra.mxu0 0
        %1383 = vmatprep.subr.bf16.mxu0 0
        %1384 = vmatpush1.bf16.msra.mxu0 0
        %1385 = vmatprep.subr.bf16.mxu0 0
        %1386 = vmatpush1.bf16.msra.mxu0 0
        %1387 = vmatprep.subr.bf16.mxu0 0
        %1388 = vmatpush1.bf16.msra.mxu0 0
        %1389 = vmatprep.subr.bf16.mxu0 0
        %1390 = vmatpush1.bf16.msra.mxu0 0
        %1391 = vmatprep.subr.bf16.mxu0 0
        %1392 = vmatpush1.bf16.msra.mxu0 0
        %1393 = vmatprep.subr.bf16.mxu0 0
        %1394 = vmatpush1.bf16.msra.mxu0 0
        %1395 = vmatprep.subr.bf16.mxu0 0
        %1396 = vmatpush1.bf16.msra.mxu0 0
        %1397 = vmatprep.subr.bf16.mxu0 0
        %1398 = vmatpush1.bf16.msra.mxu0 0
        %1399 = vmatprep.subr.bf16.mxu0 0
        %1400 = vmatpush1.bf16.msra.mxu0 0
        %1401 = vmatprep.subr.bf16.mxu0 0
        %1402 = vmatpush1.bf16.msra.mxu0 0
        %1403 = vmatprep.mubr.bf16.mxu0 0
        %1404 = vmatmul.mubr.bf16.gmra.mrb[0].mxu0 %v1369
        %v1405 = vpop.f32.mrb[0].mxu0
        %v1406 = vadd.f32 0.0, %v1405
        %v1407 = vpop.f32.mrb[0].mxu0
        %v1408 = vpop.f32.mrb[0].mxu0
        %v1409 = vadd.f32 0.0, %v1408
        %v1410 = vpop.f32.mrb[0].mxu0
        %1411 = vdwg.mxu0
        %v1412 = vpack.c.bf16 %v1409, %v1406
        %v1414 = vsel %vm1167, %v1412, 0
        %vm1416 = vcmask 1043456
        %v1418 = vsel %vm1416, %v1164, 0
        %1420 = vmatprep.subr.bf16.mxu0 0
        %1421 = vmatpush1.bf16.msra.mxu0 %v1418
        %1422 = vmatprep.subr.bf16.mxu0 0
        %1423 = vmatpush1.bf16.msra.mxu0 0
        %1424 = vmatprep.subr.bf16.mxu0 0
        %1425 = vmatpush1.bf16.msra.mxu0 0
        %1426 = vmatprep.subr.bf16.mxu0 0
        %1427 = vmatpush1.bf16.msra.mxu0 0
        %1428 = vmatprep.subr.bf16.mxu0 0
        %1429 = vmatpush1.bf16.msra.mxu0 0
        %1430 = vmatprep.subr.bf16.mxu0 0
        %1431 = vmatpush1.bf16.msra.mxu0 0
        %1432 = vmatprep.subr.bf16.mxu0 0
        %1433 = vmatpush1.bf16.msra.mxu0 0
        %1434 = vmatprep.subr.bf16.mxu0 0
        %1435 = vmatpush1.bf16.msra.mxu0 0
        %1436 = vmatprep.subr.bf16.mxu0 0
        %1437 = vmatpush1.bf16.msra.mxu0 0
        %1438 = vmatprep.subr.bf16.mxu0 0
        %1439 = vmatpush1.bf16.msra.mxu0 0
        %1440 = vmatprep.subr.bf16.mxu0 0
        %1441 = vmatpush1.bf16.msra.mxu0 0
        %1442 = vmatprep.subr.bf16.mxu0 0
        %1443 = vmatpush1.bf16.msra.mxu0 0
        %1444 = vmatprep.subr.bf16.mxu0 0
        %1445 = vmatpush1.bf16.msra.mxu0 0
        %1446 = vmatprep.subr.bf16.mxu0 0
        %1447 = vmatpush1.bf16.msra.mxu0 0
        %1448 = vmatprep.subr.bf16.mxu0 0
        %1449 = vmatpush1.bf16.msra.mxu0 0
        %1450 = vmatprep.subr.bf16.mxu0 0
        %1451 = vmatpush1.bf16.msra.mxu0 0
        %1452 = vmatprep.mubr.bf16.mxu0 0
        %1453 = vmatmul.mubr.bf16.gmra.mrb[0].mxu0 %v1414
        %v1454 = vpop.f32.mrb[0].mxu0
        %v1455 = vadd.f32 0.0, %v1454
        %v1456 = vpop.f32.mrb[0].mxu0
        %v1457 = vpop.f32.mrb[0].mxu0
        %v1458 = vadd.f32 0.0, %v1457
        %v1459 = vpop.f32.mrb[0].mxu0
        %1460 = vdwg.mxu0
        %v1462 = vsel %vm1167, %v1285, 0
        %v1465 = vsel %vm1416, %v1163, 0
        %1467 = vmatprep.subr.bf16.mxu0 0
        %1468 = vmatpush1.bf16.msra.mxu0 %v1465
        %1469 = vmatprep.subr.bf16.mxu0 0
        %1470 = vmatpush1.bf16.msra.mxu0 0
        %1471 = vmatprep.subr.bf16.mxu0 0
        %1472 = vmatpush1.bf16.msra.mxu0 0
        %1473 = vmatprep.subr.bf16.mxu0 0
        %1474 = vmatpush1.bf16.msra.mxu0 0
        %1475 = vmatprep.subr.bf16.mxu0 0
        %1476 = vmatpush1.bf16.msra.mxu0 0
        %1477 = vmatprep.subr.bf16.mxu0 0
        %1478 = vmatpush1.bf16.msra.mxu0 0
        %1479 = vmatprep.subr.bf16.mxu0 0
        %1480 = vmatpush1.bf16.msra.mxu0 0
        %1481 = vmatprep.subr.bf16.mxu0 0
        %1482 = vmatpush1.bf16.msra.mxu0 0
        %1483 = vmatprep.subr.bf16.mxu0 0
        %1484 = vmatpush1.bf16.msra.mxu0 0
        %1485 = vmatprep.subr.bf16.mxu0 0
        %1486 = vmatpush1.bf16.msra.mxu0 0
        %1487 = vmatprep.subr.bf16.mxu0 0
        %1488 = vmatpush1.bf16.msra.mxu0 0
        %1489 = vmatprep.subr.bf16.mxu0 0
        %1490 = vmatpush1.bf16.msra.mxu0 0
        %1491 = vmatprep.subr.bf16.mxu0 0
        %1492 = vmatpush1.bf16.msra.mxu0 0
        %1493 = vmatprep.subr.bf16.mxu0 0
        %1494 = vmatpush1.bf16.msra.mxu0 0
        %1495 = vmatprep.subr.bf16.mxu0 0
        %1496 = vmatpush1.bf16.msra.mxu0 0
        %1497 = vmatprep.subr.bf16.mxu0 0
        %1498 = vmatpush1.bf16.msra.mxu0 0
        %1499 = vmatprep.mubr.bf16.mxu0 0
        %1500 = vmatmul.mubr.bf16.gmra.mrb[0].mxu0 %v1462
        %v1501 = vpop.f32.mrb[0].mxu0
        %v1502 = vadd.f32 %v1455, %v1501
        %v1503 = vpop.f32.mrb[0].mxu0
        %v1504 = vpop.f32.mrb[0].mxu0
        %v1505 = vadd.f32 %v1458, %v1504
        %v1506 = vpop.f32.mrb[0].mxu0
        %1507 = vdwg.mxu0
        %1508 = vrot.lane.b32.xlu0 %v1160, 112
        %v1509 = vpop.permute.xlu0 %1508
        %1510 = vrot.lane.b32.xlu0 %v1161, 112
        %v1511 = vpop.permute.xlu0 %1510
        %v1513 = vsel %vm1167, %v1509, 0
        %v1516 = vsel %vm1167, %v1511, 0
        %1518 = vmatprep.subr.bf16.mxu0 0
        %1519 = vmatpush1.bf16.xpose.msra.mxu0 %v1516
        %1520 = vmatprep.subr.bf16.mxu0 0
        %1521 = vmatpush1.bf16.xpose.msra.mxu0 0
        %1522 = vmatprep.subr.bf16.mxu0 0
        %1523 = vmatpush1.bf16.xpose.msra.mxu0 0
        %1524 = vmatprep.subr.bf16.mxu0 0
        %1525 = vmatpush1.bf16.xpose.msra.mxu0 0
        %1526 = vmatprep.subr.bf16.mxu0 0
        %1527 = vmatpush1.bf16.xpose.msra.mxu0 0
        %1528 = vmatprep.subr.bf16.mxu0 0
        %1529 = vmatpush1.bf16.xpose.msra.mxu0 0
        %1530 = vmatprep.subr.bf16.mxu0 0
        %1531 = vmatpush1.bf16.xpose.msra.mxu0 0
        %1532 = vmatprep.subr.bf16.mxu0 0
        %1533 = vmatpush1.bf16.xpose.msra.mxu0 0
        %1534 = vmatprep.subr.bf16.mxu0 0
        %1535 = vmatpush1.bf16.xpose.msra.mxu0 0
        %1536 = vmatprep.subr.bf16.mxu0 0
        %1537 = vmatpush1.bf16.xpose.msra.mxu0 0
        %1538 = vmatprep.subr.bf16.mxu0 0
        %1539 = vmatpush1.bf16.xpose.msra.mxu0 0
        %1540 = vmatprep.subr.bf16.mxu0 0
        %1541 = vmatpush1.bf16.xpose.msra.mxu0 0
        %1542 = vmatprep.subr.bf16.mxu0 0
        %1543 = vmatpush1.bf16.xpose.msra.mxu0 0
        %1544 = vmatprep.subr.bf16.mxu0 0
        %1545 = vmatpush1.bf16.xpose.msra.mxu0 0
        %1546 = vmatprep.subr.bf16.mxu0 0
        %1547 = vmatpush1.bf16.xpose.msra.mxu0 0
        %1548 = vmatprep.subr.bf16.mxu0 0
        %1549 = vmatpush1.bf16.xpose.msra.mxu0 0
        %1550 = vmatprep.mubr.bf16.mxu0 0
        %1551 = vmatmul.mubr.bf16.gmra.mrb[0].mxu0 %v1513
        %v1552 = vpop.f32.mrb[0].mxu0
        %v1553 = vadd.f32 0.0, %v1552
        %v1554 = vpop.f32.mrb[0].mxu0
        %v1555 = vpop.f32.mrb[0].mxu0
        %v1556 = vadd.f32 0.0, %v1555
        %v1557 = vpop.f32.mrb[0].mxu0
        %1558 = vdwg.mxu0
        %v1559 = vmul.f32 %v1553, 0.35355338
        %v1560 = vmul.f32 %v1556, 0.35355338
        %v1561 = vsel %vm1217, %v1559, -inf
        %1562 = vmax.xlane.f32.xlu0 %v1561
        %v1563 = vpop.xlane.xlu0 %1562
        %v1564 = vsel %vm1217, %v1560, -inf
        %1565 = vmax.xlane.f32.xlu0 %v1564
        %v1566 = vpop.xlane.xlu0 %1565
        %v1567 = vsub.f32 %v1559, %v1563
        %v1568 = vsub.f32 %v1560, %v1566
        %v1569 = vmul.f32 %v1567, 1.442695
        %v1570 = vpow.pop %v1569
        %v1571 = vmul.f32 %v1568, 1.442695
        %v1572 = vpow.pop %v1571
        %v1573 = vsel %vm1217, %v1570, 0.0
        %1574 = vadd.xlane.f32.xlu0 %v1573
        %v1575 = vpop.xlane.xlu0 %1574
        %v1576 = vsel %vm1217, %v1572, 0.0
        %1577 = vadd.xlane.f32.xlu0 %v1576
        %v1578 = vpop.xlane.xlu0 %1577
        %v1579 = vrcp.pop %v1575
        %v1580 = vrcp.pop %v1578
        %v1581 = vmul.f32 %v1570, %v1579
        %v1582 = vmul.f32 %v1572, %v1580
        %v1583 = vpack.c.bf16 %v1582, %v1581
        %1584 = vrot.lane.b32.xlu0 %v1162, 112
        %v1585 = vpop.permute.xlu0 %1584
        %v1588 = vsel %vm1217, %v1583, 0
        %1590 = vmatprep.subr.bf16.mxu0 0
        %1591 = vmatpush1.bf16.msra.mxu0 %v1585
        %1592 = vmatprep.subr.bf16.mxu0 0
        %1593 = vmatpush1.bf16.msra.mxu0 0
        %1594 = vmatprep.subr.bf16.mxu0 0
        %1595 = vmatpush1.bf16.msra.mxu0 0
        %1596 = vmatprep.subr.bf16.mxu0 0
        %1597 = vmatpush1.bf16.msra.mxu0 0
        %1598 = vmatprep.subr.bf16.mxu0 0
        %1599 = vmatpush1.bf16.msra.mxu0 0
        %1600 = vmatprep.subr.bf16.mxu0 0
        %1601 = vmatpush1.bf16.msra.mxu0 0
        %1602 = vmatprep.subr.bf16.mxu0 0
        %1603 = vmatpush1.bf16.msra.mxu0 0
        %1604 = vmatprep.subr.bf16.mxu0 0
        %1605 = vmatpush1.bf16.msra.mxu0 0
        %1606 = vmatprep.subr.bf16.mxu0 0
        %1607 = vmatpush1.bf16.msra.mxu0 0
        %1608 = vmatprep.subr.bf16.mxu0 0
        %1609 = vmatpush1.bf16.msra.mxu0 0
        %1610 = vmatprep.subr.bf16.mxu0 0
        %1611 = vmatpush1.bf16.msra.mxu0 0
        %1612 = vmatprep.subr.bf16.mxu0 0
        %1613 = vmatpush1.bf16.msra.mxu0 0
        %1614 = vmatprep.subr.bf16.mxu0 0
        %1615 = vmatpush1.bf16.msra.mxu0 0
        %1616 = vmatprep.subr.bf16.mxu0 0
        %1617 = vmatpush1.bf16.msra.mxu0 0
        %1618 = vmatprep.subr.bf16.mxu0 0
        %1619 = vmatpush1.bf16.msra.mxu0 0
        %1620 = vmatprep.subr.bf16.mxu0 0
        %1621 = vmatpush1.bf16.msra.mxu0 0
        %1622 = vmatprep.mubr.bf16.mxu0 0
        %1623 = vmatmul.mubr.bf16.gmra.mrb[0].mxu0 %v1588
        %v1624 = vpop.f32.mrb[0].mxu0
        %v1625 = vadd.f32 0.0, %v1624
        %v1626 = vpop.f32.mrb[0].mxu0
        %v1627 = vpop.f32.mrb[0].mxu0
        %v1628 = vadd.f32 0.0, %v1627
        %v1629 = vpop.f32.mrb[0].mxu0
        %1630 = vdwg.mxu0
        %v1631 = vpack.c.bf16 %v1628, %v1625
        %v1633 = vsel %vm1167, %v1631, 0
        %v1636 = vsel %vm1416, %v1165, 0
        %1638 = vmatprep.subr.bf16.mxu0 0
        %1639 = vmatpush1.bf16.msra.mxu0 %v1636
        %1640 = vmatprep.subr.bf16.mxu0 0
        %1641 = vmatpush1.bf16.msra.mxu0 0
        %1642 = vmatprep.subr.bf16.mxu0 0
        %1643 = vmatpush1.bf16.msra.mxu0 0
        %1644 = vmatprep.subr.bf16.mxu0 0
        %1645 = vmatpush1.bf16.msra.mxu0 0
        %1646 = vmatprep.subr.bf16.mxu0 0
        %1647 = vmatpush1.bf16.msra.mxu0 0
        %1648 = vmatprep.subr.bf16.mxu0 0
        %1649 = vmatpush1.bf16.msra.mxu0 0
        %1650 = vmatprep.subr.bf16.mxu0 0
        %1651 = vmatpush1.bf16.msra.mxu0 0
        %1652 = vmatprep.subr.bf16.mxu0 0
        %1653 = vmatpush1.bf16.msra.mxu0 0
        %1654 = vmatprep.subr.bf16.mxu0 0
        %1655 = vmatpush1.bf16.msra.mxu0 0
        %1656 = vmatprep.subr.bf16.mxu0 0
        %1657 = vmatpush1.bf16.msra.mxu0 0
        %1658 = vmatprep.subr.bf16.mxu0 0
        %1659 = vmatpush1.bf16.msra.mxu0 0
        %1660 = vmatprep.subr.bf16.mxu0 0
        %1661 = vmatpush1.bf16.msra.mxu0 0
        %1662 = vmatprep.subr.bf16.mxu0 0
        %1663 = vmatpush1.bf16.msra.mxu0 0
        %1664 = vmatprep.subr.bf16.mxu0 0
        %1665 = vmatpush1.bf16.msra.mxu0 0
        %1666 = vmatprep.subr.bf16.mxu0 0
        %1667 = vmatpush1.bf16.msra.mxu0 0
        %1668 = vmatprep.subr.bf16.mxu0 0
        %1669 = vmatpush1.bf16.msra.mxu0 0
        %1670 = vmatprep.mubr.bf16.mxu0 0
        %1671 = vmatmul.mubr.bf16.gmra.mrb[0].mxu0 %v1633
        %v1672 = vpop.f32.mrb[0].mxu0
        %v1673 = vadd.f32 0.0, %v1672
        %v1674 = vpop.f32.mrb[0].mxu0
        %v1675 = vpop.f32.mrb[0].mxu0
        %v1676 = vadd.f32 0.0, %v1675
        %v1677 = vpop.f32.mrb[0].mxu0
        %1678 = vdwg.mxu0
        %v1679 = vadd.f32 %v1502, %v1673
        %v1680 = vadd.f32 %v1505, %v1676
        %1681 = vrot.lane.b32.xlu0 %v1160, 104
        %v1682 = vpop.permute.xlu0 %1681
        %1683 = vrot.lane.b32.xlu0 %v1161, 104
        %v1684 = vpop.permute.xlu0 %1683
        %v1686 = vsel %vm1167, %v1682, 0
        %v1689 = vsel %vm1167, %v1684, 0
        %1691 = vmatprep.subr.bf16.mxu0 0
        %1692 = vmatpush1.bf16.xpose.msra.mxu0 %v1689
        %1693 = vmatprep.subr.bf16.mxu0 0
        %1694 = vmatpush1.bf16.xpose.msra.mxu0 0
        %1695 = vmatprep.subr.bf16.mxu0 0
        %1696 = vmatpush1.bf16.xpose.msra.mxu0 0
        %1697 = vmatprep.subr.bf16.mxu0 0
        %1698 = vmatpush1.bf16.xpose.msra.mxu0 0
        %1699 = vmatprep.subr.bf16.mxu0 0
        %1700 = vmatpush1.bf16.xpose.msra.mxu0 0
        %1701 = vmatprep.subr.bf16.mxu0 0
        %1702 = vmatpush1.bf16.xpose.msra.mxu0 0
        %1703 = vmatprep.subr.bf16.mxu0 0
        %1704 = vmatpush1.bf16.xpose.msra.mxu0 0
        %1705 = vmatprep.subr.bf16.mxu0 0
        %1706 = vmatpush1.bf16.xpose.msra.mxu0 0
        %1707 = vmatprep.subr.bf16.mxu0 0
        %1708 = vmatpush1.bf16.xpose.msra.mxu0 0
        %1709 = vmatprep.subr.bf16.mxu0 0
        %1710 = vmatpush1.bf16.xpose.msra.mxu0 0
        %1711 = vmatprep.subr.bf16.mxu0 0
        %1712 = vmatpush1.bf16.xpose.msra.mxu0 0
        %1713 = vmatprep.subr.bf16.mxu0 0
        %1714 = vmatpush1.bf16.xpose.msra.mxu0 0
        %1715 = vmatprep.subr.bf16.mxu0 0
        %1716 = vmatpush1.bf16.xpose.msra.mxu0 0
        %1717 = vmatprep.subr.bf16.mxu0 0
        %1718 = vmatpush1.bf16.xpose.msra.mxu0 0
        %1719 = vmatprep.subr.bf16.mxu0 0
        %1720 = vmatpush1.bf16.xpose.msra.mxu0 0
        %1721 = vmatprep.subr.bf16.mxu0 0
        %1722 = vmatpush1.bf16.xpose.msra.mxu0 0
        %1723 = vmatprep.mubr.bf16.mxu0 0
        %1724 = vmatmul.mubr.bf16.gmra.mrb[0].mxu0 %v1686
        %v1725 = vpop.f32.mrb[0].mxu0
        %v1726 = vadd.f32 0.0, %v1725
        %v1727 = vpop.f32.mrb[0].mxu0
        %v1728 = vpop.f32.mrb[0].mxu0
        %v1729 = vadd.f32 0.0, %v1728
        %v1730 = vpop.f32.mrb[0].mxu0
        %1731 = vdwg.mxu0
        %v1732 = vmul.f32 %v1726, 0.35355338
        %v1733 = vmul.f32 %v1729, 0.35355338
        %v1734 = vsel %vm1217, %v1732, -inf
        %1735 = vmax.xlane.f32.xlu0 %v1734
        %v1736 = vpop.xlane.xlu0 %1735
        %v1737 = vsel %vm1217, %v1733, -inf
        %1738 = vmax.xlane.f32.xlu0 %v1737
        %v1739 = vpop.xlane.xlu0 %1738
        %v1740 = vsub.f32 %v1732, %v1736
        %v1741 = vsub.f32 %v1733, %v1739
        %v1742 = vmul.f32 %v1740, 1.442695
        %v1743 = vpow.pop %v1742
        %v1744 = vmul.f32 %v1741, 1.442695
        %v1745 = vpow.pop %v1744
        %v1746 = vsel %vm1217, %v1743, 0.0
        %1747 = vadd.xlane.f32.xlu0 %v1746
        %v1748 = vpop.xlane.xlu0 %1747
        %v1749 = vsel %vm1217, %v1745, 0.0
        %1750 = vadd.xlane.f32.xlu0 %v1749
        %v1751 = vpop.xlane.xlu0 %1750
        %v1752 = vrcp.pop %v1748
        %v1753 = vrcp.pop %v1751
        %v1754 = vmul.f32 %v1743, %v1752
        %v1755 = vmul.f32 %v1745, %v1753
        %v1756 = vpack.c.bf16 %v1755, %v1754
        %1757 = vrot.lane.b32.xlu0 %v1162, 104
        %v1758 = vpop.permute.xlu0 %1757
        %v1761 = vsel %vm1217, %v1756, 0
        %1763 = vmatprep.subr.bf16.mxu0 0
        %1764 = vmatpush1.bf16.msra.mxu0 %v1758
        %1765 = vmatprep.subr.bf16.mxu0 0
        %1766 = vmatpush1.bf16.msra.mxu0 0
        %1767 = vmatprep.subr.bf16.mxu0 0
        %1768 = vmatpush1.bf16.msra.mxu0 0
        %1769 = vmatprep.subr.bf16.mxu0 0
        %1770 = vmatpush1.bf16.msra.mxu0 0
        %1771 = vmatprep.subr.bf16.mxu0 0
        %1772 = vmatpush1.bf16.msra.mxu0 0
        %1773 = vmatprep.subr.bf16.mxu0 0
        %1774 = vmatpush1.bf16.msra.mxu0 0
        %1775 = vmatprep.subr.bf16.mxu0 0
        %1776 = vmatpush1.bf16.msra.mxu0 0
        %1777 = vmatprep.subr.bf16.mxu0 0
        %1778 = vmatpush1.bf16.msra.mxu0 0
        %1779 = vmatprep.subr.bf16.mxu0 0
        %1780 = vmatpush1.bf16.msra.mxu0 0
        %1781 = vmatprep.subr.bf16.mxu0 0
        %1782 = vmatpush1.bf16.msra.mxu0 0
        %1783 = vmatprep.subr.bf16.mxu0 0
        %1784 = vmatpush1.bf16.msra.mxu0 0
        %1785 = vmatprep.subr.bf16.mxu0 0
        %1786 = vmatpush1.bf16.msra.mxu0 0
        %1787 = vmatprep.subr.bf16.mxu0 0
        %1788 = vmatpush1.bf16.msra.mxu0 0
        %1789 = vmatprep.subr.bf16.mxu0 0
        %1790 = vmatpush1.bf16.msra.mxu0 0
        %1791 = vmatprep.subr.bf16.mxu0 0
        %1792 = vmatpush1.bf16.msra.mxu0 0
        %1793 = vmatprep.subr.bf16.mxu0 0
        %1794 = vmatpush1.bf16.msra.mxu0 0
        %1795 = vmatprep.mubr.bf16.mxu0 0
        %1796 = vmatmul.mubr.bf16.gmra.mrb[0].mxu0 %v1761
        %v1797 = vpop.f32.mrb[0].mxu0
        %v1798 = vadd.f32 0.0, %v1797
        %v1799 = vpop.f32.mrb[0].mxu0
        %v1800 = vpop.f32.mrb[0].mxu0
        %v1801 = vadd.f32 0.0, %v1800
        %v1802 = vpop.f32.mrb[0].mxu0
        %1803 = vdwg.mxu0
        %v1804 = vpack.c.bf16 %v1801, %v1798
        %v1806 = vsel %vm1167, %v1804, 0
        %v1809 = vsel %vm1416, %v1166, 0
        %1811 = vmatprep.subr.bf16.mxu0 0
        %1812 = vmatpush1.bf16.msra.mxu0 %v1809
        %1813 = vmatprep.subr.bf16.mxu0 0
        %1814 = vmatpush1.bf16.msra.mxu0 0
        %1815 = vmatprep.subr.bf16.mxu0 0
        %1816 = vmatpush1.bf16.msra.mxu0 0
        %1817 = vmatprep.subr.bf16.mxu0 0
        %1818 = vmatpush1.bf16.msra.mxu0 0
        %1819 = vmatprep.subr.bf16.mxu0 0
        %1820 = vmatpush1.bf16.msra.mxu0 0
        %1821 = vmatprep.subr.bf16.mxu0 0
        %1822 = vmatpush1.bf16.msra.mxu0 0
        %1823 = vmatprep.subr.bf16.mxu0 0
        %1824 = vmatpush1.bf16.msra.mxu0 0
        %1825 = vmatprep.subr.bf16.mxu0 0
        %1826 = vmatpush1.bf16.msra.mxu0 0
        %1827 = vmatprep.subr.bf16.mxu0 0
        %1828 = vmatpush1.bf16.msra.mxu0 0
        %1829 = vmatprep.subr.bf16.mxu0 0
        %1830 = vmatpush1.bf16.msra.mxu0 0
        %1831 = vmatprep.subr.bf16.mxu0 0
        %1832 = vmatpush1.bf16.msra.mxu0 0
        %1833 = vmatprep.subr.bf16.mxu0 0
        %1834 = vmatpush1.bf16.msra.mxu0 0
        %1835 = vmatprep.subr.bf16.mxu0 0
        %1836 = vmatpush1.bf16.msra.mxu0 0
        %1837 = vmatprep.subr.bf16.mxu0 0
        %1838 = vmatpush1.bf16.msra.mxu0 0
        %1839 = vmatprep.subr.bf16.mxu0 0
        %1840 = vmatpush1.bf16.msra.mxu0 0
        %1841 = vmatprep.subr.bf16.mxu0 0
        %1842 = vmatpush1.bf16.msra.mxu0 0
        %1843 = vmatprep.mubr.bf16.mxu0 0
        %1844 = vmatmul.mubr.bf16.gmra.mrb[0].mxu0 %v1806
        %v1845 = vpop.f32.mrb[0].mxu0
        %v1846 = vadd.f32 0.0, %v1845
        %v1847 = vpop.f32.mrb[0].mxu0
        %v1848 = vpop.f32.mrb[0].mxu0
        %v1849 = vadd.f32 0.0, %v1848
        %v1850 = vpop.f32.mrb[0].mxu0
        %1851 = vdwg.mxu0
        %v1852 = vadd.f32 %v1679, %v1846
        %v1853 = vadd.f32 %v1680, %v1849
        %v1854 = vld [vmem:[%s919] sm:$0x1]
        %v1856 = vlaneseq
        %v1857 = vshrl.u32 %v1856, 7
        %v1858 = vsub.s32 0, %v1857
        %v1859 = vrot.slane %v1854, %v1858
        %v1861 = vadd.f32 %v1852, %v1859
        %v1862 = vadd.f32 %v1853, %v1859
        %v1863 = vadd.f32 %v953, %v1861
        %v1864 = vadd.f32 %v954, %v1862
        %v1865 = vsel %vm984, %v1863, 0.0
        %1866 = vadd.xlane.f32.xlu0 %v1865
        %v1867 = vpop.xlane.xlu0 %1866
        %v1868 = vsel %vm984, %v1864, 0.0
        %1869 = vadd.xlane.f32.xlu0 %v1868
        %v1870 = vpop.xlane.xlu0 %1869
        %v1871 = vrcp.pop 32.0
        %v1872 = vmul.f32 %v1867, %v1871
        %v1873 = vmul.f32 %v1870, %v1871
        %v1874 = vsub.f32 %v1863, %v1872
        %v1875 = vsub.f32 %v1864, %v1873
        %v1876 = vmul.f32 %v1874, %v1874
        %v1877 = vmul.f32 %v1875, %v1875
        %v1878 = vsel %vm984, %v1876, 0.0
        %1879 = vadd.xlane.f32.xlu0 %v1878
        %v1880 = vpop.xlane.xlu0 %1879
        %v1881 = vsel %vm984, %v1877, 0.0
        %1882 = vadd.xlane.f32.xlu0 %v1881
        %v1883 = vpop.xlane.xlu0 %1882
        %v1884 = vmul.f32 %v1880, %v1871
        %v1885 = vmul.f32 %v1883, %v1871
        %v1886 = vadd.f32 %v1884, 1e-05
        %v1887 = vadd.f32 %v1885, 1e-05
        %v1888 = vrsqrt.pop %v1886
        %v1889 = vrsqrt.pop %v1887
        %v1890 = vmul.f32 %v1874, %v1888
        %v1891 = vmul.f32 %v1875, %v1889
        %v1892 = vld [vmem:[%s922] sm:$0x1]
        %v1894 = vlaneseq
        %v1895 = vshrl.u32 %v1894, 7
        %v1896 = vsub.s32 0, %v1895
        %v1897 = vrot.slane %v1892, %v1896
        %v1899 = vmul.f32 %v1890, %v1897
        %v1900 = vmul.f32 %v1891, %v1897
        %v1901 = vld [vmem:[%s925] sm:$0x1]
        %v1903 = vlaneseq
        %v1904 = vshrl.u32 %v1903, 7
        %v1905 = vsub.s32 0, %v1904
        %v1906 = vrot.slane %v1901, %v1905
        %v1908 = vadd.f32 %v1899, %v1906
        %v1909 = vadd.f32 %v1900, %v1906
        %v1910 = vpack.c.bf16 %v1909, %v1908
        %v1911 = vld [vmem:[%s775] sm:$0xf]
        %v1912 = vld [vmem:[%s775 + $0x4] sm:$0xf]
        %v1913 = vld [vmem:[%s775 + $0x8] sm:$0xf]
        %v1914 = vld [vmem:[%s775 + $0xc] sm:$0xf]
        %v1915 = vld [vmem:[%s928] sm:$0x1]
        %v1917 = vlaneseq
        %v1918 = vshrl.u32 %v1917, 7
        %v1919 = vsub.s32 0, %v1918
        %v1920 = vrot.slane %v1915, %v1919
        %v1926 = vunpack.c.l.b16 %v1911
        %v1927 = vunpack.c.l.b16 %v1912
        %v1928 = vunpack.c.l.b16 %v1913
        %v1929 = vunpack.c.l.b16 %v1914
        %v1930 = vpack.c.b16 %v1927, %v1926
        %v1931 = vpack.c.b16 %v1929, %v1928
        %v1935 = vsel %vm984, %v1910, 0
        %1937 = vmatprep.subr.bf16.mxu0 0
        %1938 = vmatpush1.bf16.msra.mxu0 %v1930
        %1939 = vmatprep.subr.bf16.mxu0 0
        %1940 = vmatpush1.bf16.msra.mxu0 %v1931
        %1941 = vmatprep.subr.bf16.mxu0 0
        %1942 = vmatpush1.bf16.msra.mxu0 0
        %1943 = vmatprep.subr.bf16.mxu0 0
        %1944 = vmatpush1.bf16.msra.mxu0 0
        %1945 = vmatprep.subr.bf16.mxu0 0
        %1946 = vmatpush1.bf16.msra.mxu0 0
        %1947 = vmatprep.subr.bf16.mxu0 0
        %1948 = vmatpush1.bf16.msra.mxu0 0
        %1949 = vmatprep.subr.bf16.mxu0 0
        %1950 = vmatpush1.bf16.msra.mxu0 0
        %1951 = vmatprep.subr.bf16.mxu0 0
        %1952 = vmatpush1.bf16.msra.mxu0 0
        %1953 = vmatprep.subr.bf16.mxu0 0
        %1954 = vmatpush1.bf16.msra.mxu0 0
        %1955 = vmatprep.subr.bf16.mxu0 0
        %1956 = vmatpush1.bf16.msra.mxu0 0
        %1957 = vmatprep.subr.bf16.mxu0 0
        %1958 = vmatpush1.bf16.msra.mxu0 0
        %1959 = vmatprep.subr.bf16.mxu0 0
        %1960 = vmatpush1.bf16.msra.mxu0 0
        %1961 = vmatprep.subr.bf16.mxu0 0
        %1962 = vmatpush1.bf16.msra.mxu0 0
        %1963 = vmatprep.subr.bf16.mxu0 0
        %1964 = vmatpush1.bf16.msra.mxu0 0
        %1965 = vmatprep.subr.bf16.mxu0 0
        %1966 = vmatpush1.bf16.msra.mxu0 0
        %1967 = vmatprep.subr.bf16.mxu0 0
        %1968 = vmatpush1.bf16.msra.mxu0 0
        %1969 = vmatprep.mubr.bf16.mxu0 0
        %1970 = vmatmul.mubr.bf16.gmra.mrb[0].mxu0 %v1935
        %v1971 = vpop.f32.mrb[0].mxu0
        %v1972 = vadd.f32 %v1920, %v1971
        %v1973 = vpop.f32.mrb[0].mxu0
        %v1974 = vpop.f32.mrb[0].mxu0
        %v1975 = vadd.f32 %v1920, %v1974
        %v1976 = vpop.f32.mrb[0].mxu0
        %1977 = vdwg.mxu0
        %v1978 = vmax.f32 %v1972, 0.0
        %v1979 = vmax.f32 %v1975, 0.0
        %v1980 = vpack.c.bf16 %v1979, %v1978
        %v1981 = vld [vmem:[%s933] sm:$0xf]
        %v1982 = vld [vmem:[%s933 + $0x4] sm:$0xf]
        %v1983 = vld [vmem:[%s933 + $0x8] sm:$0xf]
        %v1984 = vld [vmem:[%s933 + $0xc] sm:$0xf]
        %v1985 = vld [vmem:[%s933 + $0x10] sm:$0xf]
        %v1986 = vld [vmem:[%s933 + $0x14] sm:$0xf]
        %v1987 = vld [vmem:[%s933 + $0x18] sm:$0xf]
        %v1988 = vld [vmem:[%s933 + $0x1c] sm:$0xf]
        %v1989 = vld [vmem:[%s936] sm:$0x1]
        %v1991 = vlaneseq
        %v1992 = vshrl.u32 %v1991, 7
        %v1993 = vsub.s32 0, %v1992
        %v1994 = vrot.slane %v1989, %v1993
        %v2004 = vunpack.c.l.b16 %v1981
        %v2005 = vunpack.c.l.b16 %v1982
        %v2006 = vunpack.c.l.b16 %v1983
        %v2007 = vunpack.c.l.b16 %v1984
        %v2008 = vunpack.c.l.b16 %v1985
        %v2009 = vunpack.c.l.b16 %v1986
        %v2010 = vunpack.c.l.b16 %v1987
        %v2011 = vunpack.c.l.b16 %v1988
        %v2012 = vpack.c.b16 %v2005, %v2004
        %v2013 = vpack.c.b16 %v2007, %v2006
        %v2014 = vpack.c.b16 %v2009, %v2008
        %v2015 = vpack.c.b16 %v2011, %v2010
        %vm2020 = vcmask 523264
        %v2022 = vsel %vm2020, %v1980, 0
        %2024 = vmatprep.subr.bf16.mxu0 0
        %2025 = vmatpush1.bf16.msra.mxu0 %v2012
        %2026 = vmatprep.subr.bf16.mxu0 0
        %2027 = vmatpush1.bf16.msra.mxu0 %v2013
        %2028 = vmatprep.subr.bf16.mxu0 0
        %2029 = vmatpush1.bf16.msra.mxu0 %v2014
        %2030 = vmatprep.subr.bf16.mxu0 0
        %2031 = vmatpush1.bf16.msra.mxu0 %v2015
        %2032 = vmatprep.subr.bf16.mxu0 0
        %2033 = vmatpush1.bf16.msra.mxu0 0
        %2034 = vmatprep.subr.bf16.mxu0 0
        %2035 = vmatpush1.bf16.msra.mxu0 0
        %2036 = vmatprep.subr.bf16.mxu0 0
        %2037 = vmatpush1.bf16.msra.mxu0 0
        %2038 = vmatprep.subr.bf16.mxu0 0
        %2039 = vmatpush1.bf16.msra.mxu0 0
        %2040 = vmatprep.subr.bf16.mxu0 0
        %2041 = vmatpush1.bf16.msra.mxu0 0
        %2042 = vmatprep.subr.bf16.mxu0 0
        %2043 = vmatpush1.bf16.msra.mxu0 0
        %2044 = vmatprep.subr.bf16.mxu0 0
        %2045 = vmatpush1.bf16.msra.mxu0 0
        %2046 = vmatprep.subr.bf16.mxu0 0
        %2047 = vmatpush1.bf16.msra.mxu0 0
        %2048 = vmatprep.subr.bf16.mxu0 0
        %2049 = vmatpush1.bf16.msra.mxu0 0
        %2050 = vmatprep.subr.bf16.mxu0 0
        %2051 = vmatpush1.bf16.msra.mxu0 0
        %2052 = vmatprep.subr.bf16.mxu0 0
        %2053 = vmatpush1.bf16.msra.mxu0 0
        %2054 = vmatprep.subr.bf16.mxu0 0
        %2055 = vmatpush1.bf16.msra.mxu0 0
        %2056 = vmatprep.mubr.bf16.mxu0 0
        %2057 = vmatmul.mubr.bf16.gmra.mrb[0].mxu0 %v2022
        %v2058 = vpop.f32.mrb[0].mxu0
        %v2059 = vadd.f32 %v1994, %v2058
        %v2060 = vpop.f32.mrb[0].mxu0
        %v2061 = vpop.f32.mrb[0].mxu0
        %v2062 = vadd.f32 %v1994, %v2061
        %v2063 = vpop.f32.mrb[0].mxu0
        %2064 = vdwg.mxu0
        %v2065 = vadd.f32 %v1908, %v2059
        %v2066 = vadd.f32 %v1909, %v2062
        %v2067 = vsel %vm984, %v2065, 0.0
        %2068 = vadd.xlane.f32.xlu0 %v2067
        %v2069 = vpop.xlane.xlu0 %2068
        %v2070 = vsel %vm984, %v2066, 0.0
        %2071 = vadd.xlane.f32.xlu0 %v2070
        %v2072 = vpop.xlane.xlu0 %2071
        %v2073 = vmul.f32 %v2069, %v1871
        %v2074 = vmul.f32 %v2072, %v1871
        %v2075 = vsub.f32 %v2065, %v2073
        %v2076 = vsub.f32 %v2066, %v2074
        %v2077 = vmul.f32 %v2075, %v2075
        %v2078 = vmul.f32 %v2076, %v2076
        %v2079 = vsel %vm984, %v2077, 0.0
        %2080 = vadd.xlane.f32.xlu0 %v2079
        %v2081 = vpop.xlane.xlu0 %2080
        %v2082 = vsel %vm984, %v2078, 0.0
        %2083 = vadd.xlane.f32.xlu0 %v2082
        %v2084 = vpop.xlane.xlu0 %2083
        %v2085 = vmul.f32 %v2081, %v1871
        %v2086 = vmul.f32 %v2084, %v1871
        %v2087 = vadd.f32 %v2085, 1e-05
        %v2088 = vadd.f32 %v2086, 1e-05
        %v2089 = vrsqrt.pop %v2087
        %v2090 = vrsqrt.pop %v2088
        %v2091 = vmul.f32 %v2075, %v2089
        %v2092 = vmul.f32 %v2076, %v2090
        %v2093 = vld [vmem:[%s939] sm:$0x1]
        %v2095 = vlaneseq
        %v2096 = vshrl.u32 %v2095, 7
        %v2097 = vsub.s32 0, %v2096
        %v2098 = vrot.slane %v2093, %v2097
        %v2100 = vmul.f32 %v2091, %v2098
        %v2101 = vmul.f32 %v2092, %v2098
        %v2102 = vld [vmem:[%s942] sm:$0x1]
        %v2104 = vlaneseq
        %v2105 = vshrl.u32 %v2104, 7
        %v2106 = vsub.s32 0, %v2105
        %v2107 = vrot.slane %v2102, %v2106
        %v2109 = vadd.f32 %v2100, %v2107
        %v2110 = vadd.f32 %v2101, %v2107
        %2111 = vst.msk [vmem:[%s892] sm:$0xff] %vm984, %v2109
        %2112 = vst.msk [vmem:[%s892 + $0x8] sm:$0xff] %vm984, %v2110
        %s2113 = sand.u32 %s529, 1
        %s2114 = scalar_lea.sflag [#allocation4], %s2113
        %s2115 = sand.u32 %s529, 1
        %s2116 = smul.addr %s2115, 16
        %s2117 = scalar_lea.vmem [#allocation10], %s2116
        // Predicated region
        $region113: #{tpu_custom_call.1} parent=91 // pred_check
          %p2118 = pneg %p539
        $region114: #{tpu_custom_call.1} parent=91 // pred_check_branch
          %2120 = sbr.rel (%p2118) target = $region116
        $region115: #{tpu_custom_call.1} parent=91 // pred_region
          %s2122 = ssub.s32 256, 256
          %2123 = vsyncadd %s2114, %s2122
          %s2124 = smul.addr %s45, 2
          %s2125 = smul.addr %s2124, 128
          %s2126 = scalar_lea.hbm %s18, %s2125
          %s2127 = sshll.u32 %s2117, 4
          %s2128 = int_to_ptr.vmem [resolvable:$true] %s2127
          %2133 = dma.vmem_to_hbm [thread:$0]  %s2128, 256, %s2126, %s2114, 128, 128, 8
        $region116: #{tpu_custom_call.1} parent=91 // pred_fallthru
          _
      $region92: #{tpu_custom_call.1} parent=5 // pred_fallthru
        _
      %p2134 = scmp.le.s32.totalorder 2, %s36
      // Predicated region
      $region117: #{tpu_custom_call.1} parent=5 // pred_check
        %p2135 = pneg %p2134
      $region118: #{tpu_custom_call.1} parent=5 // pred_check_branch
        %2137 = sbr.rel (%p2135) target = $region120
      $region119: #{tpu_custom_call.1} parent=5 // pred_region
        %s2138 = ssub.s32 %s36, 2
        // Predicated region
        $region121: #{tpu_custom_call.1} parent=119 // pred_check
          %p2139 = pneg %p545
        $region122: #{tpu_custom_call.1} parent=119 // pred_check_branch
          %2141 = sbr.rel (%p2139) target = $region124
        $region123: #{tpu_custom_call.1} parent=119 // pred_region
          %s2142 = sand.u32 %s530, 1
          %s2143 = scalar_lea.sflag [#allocation4], %s2142
          %s2144 = sand.u32 %s530, 1
          %s2145 = smul.addr %s2144, 16
          %s2146 = scalar_lea.vmem [#allocation10], %s2145
          %2147 = dma.done %s2143, 256
        $region124: #{tpu_custom_call.1} parent=119 // pred_fallthru
          _
      $region120: #{tpu_custom_call.1} parent=5 // pred_fallthru
        _
    $region6: #{tpu_custom_call.1} parent=1 // loop_footer
      %s40 = sadd.s32 1, %s36
    $region7: #{tpu_custom_call.1} parent=1 // loop_footer_branch
      %35 = sbr.rel target = $region3
    $region8: #{tpu_custom_call.1} parent=1 // loop_exit
      _
    %2148 = vsyncpa [#allocation3], 1
    %s2149 = scalar_lea.sflag [#allocation3], 1
    %2150 = vsyncpa %s2149, 1
    %2151 = vsyncpa [#allocation6], 1
    %s2152 = scalar_lea.sflag [#allocation6], 1
    %2153 = vsyncpa %s2152, 1
    %2154 = vsyncpa [#allocation9], 1
    %s2155 = scalar_lea.sflag [#allocation9], 1
    %2156 = vsyncpa %s2155, 1
    %2157 = vsyncpa [#allocation4], 1
    %s2158 = scalar_lea.sflag [#allocation4], 1
    %2159 = vsyncpa %s2158, 1

</llo_original>
